<compile_context>
chip_gen: v7x
topology: tpu7x:2x2x1
jax: 0.10.0
libtpu: 0.0.40
codegen_flags: <defaults>
</compile_context>

<pallas_src>
import functools

import jax
import jax.numpy as jnp
from jax import lax
from jax.experimental import pallas as pl
from jax.experimental.pallas import tpu as pltpu


_HALO = 128          # causal halo per length tile; lane (128) aligned, >= receptive field
_LEAKY_SLOPE = 0.1   # matches F.leaky_relu(x, 0.1)


def _downsample_kernel(x_ref, halo_ref, pool_ref,
                       wres_ref, bres_ref,
                       w1_ref, b1_ref, w2_ref, b2_ref, w3_ref, b3_ref,
                       o_ref, *, halo, tile_l, factor):
    lt = pl.program_id(1)
    w_len = halo + tile_l
    win_start = lt * tile_l - halo

    # Global-position validity of every window column.  Only the first length
    # tile has columns before the sequence start; for lt >= 1 this is all-true.
    gcol = lax.broadcasted_iota(jnp.int32, (1, w_len), 1) + win_start
    valid = gcol >= 0

    # Causal window [ previous-tile halo | current tile ].  Both pieces are
    # lane (128) aligned, so this is a cheap vreg-level concat (no scratch
    # store/reload).  The halo view holds bogus data on the first tile; the
    # `valid` mask zeroes it, reproducing torch's causal zero padding.
    v = jnp.concatenate([halo_ref[...], x_ref[...]], axis=1)   # (Ce_in, w_len)
    v = jnp.where(valid, v, 0.0)

    def leaky(t):
        return jnp.where(t >= 0, t, _LEAKY_SLOPE * t)

    def dcc(t, w_ref, b_ref, d):
        # w_ref[k] = torch_weight[:, :, k] (block-diag over batch groups);
        # tap k has delay (2-k)*d.  Circular roll wrap only pollutes window
        # columns < 2*d <= 8 < halo, which never feed the retained outputs.
        # Straight f32 dot-sum chain -> MRB in-place accumulation on v7x.
        acc = jnp.dot(w_ref[0], pltpu.roll(t, shift=2 * d, axis=1),
                      preferred_element_type=jnp.float32)
        acc = acc + jnp.dot(w_ref[1], pltpu.roll(t, shift=d, axis=1),
                            preferred_element_type=jnp.float32)
        acc = acc + jnp.dot(w_ref[2], t, preferred_element_type=jnp.float32)
        return acc + b_ref[...]

    # residual branch (pointwise conv) -- only needed on the tile itself
    res = jnp.dot(wres_ref[...], x_ref[...],
                  preferred_element_type=jnp.float32) + bres_ref[...]

    h = dcc(leaky(v), w1_ref, b1_ref, 1)
    # Re-zero pre-sequence columns so the next layer's causal padding reads
    # zeros (torch per-layer zero padding).  No-op select for lt >= 1.
    h = jnp.where(valid, h, 0.0)
    h = dcc(leaky(h), w2_ref, b2_ref, 2)
    h = jnp.where(valid, h, 0.0)
    h = dcc(leaky(h), w3_ref, b3_ref, 4)

    y = h[:, halo:] + res                                      # (Ce_out, tile_l)

    # AvgPool1d(factor): chunked matmuls against one small block of the
    # block-diagonal pooling matrix.  Output stores are lane-dense (128 wide).
    chunk_in = 128 * factor
    for j in range(tile_l // chunk_in):                        # static unroll
        o_ref[:, j * 128:(j + 1) * 128] = jnp.dot(
            y[:, j * chunk_in:(j + 1) * chunk_in], pool_ref[...],
            preferred_element_type=jnp.float32).astype(o_ref.dtype)


def _pick_tile_l(l_used, factor):
    """Largest convenient length tile; tile_l % (128*factor) == 0 always."""
    unit = 128 * factor
    for cand in (8192, 4096, 2048, 1024, 512):
        if cand % unit == 0 and cand <= max(l_used, unit):
            return cand
    return unit


def downsample_pallas(x_ncl, params, factor=4):
    """x_ncl: (N, C_in, L) float32, PyTorch NCL layout -> (N, C_out, L // factor)."""
    x_ncl = x_ncl.astype(jnp.float32)
    N, C_in, L = x_ncl.shape
    C_out = params["w_res"].shape[0]
    Lp = L // factor
    assert Lp >= 1, "sequence shorter than one pooling window"
    l_used = Lp * factor                       # AvgPool1d drops the tail like torch

    halo = _HALO
    # halo must cover the receptive field (3-1)*(1+2+4)=14, the largest roll
    # shift (8), and be a whole number of 128-lane vregs.
    assert halo % 128 == 0 and halo >= 14 and halo >= 8

    # ---- batch-group folding: put g batches on the sublane axis ------------
    g = 1
    for cand in range(min(N, max(1, 8 // C_in)), 0, -1):
        if N % cand == 0:
            g = cand
            break
    nb = N // g
    Ce_in, Ce_out = g * C_in, g * C_out

    # ---- length tiling with right zero-padding ------------------------------
    tile_l = _pick_tile_l(l_used, factor)
    assert tile_l % (128 * factor) == 0 and tile_l % halo == 0
    nt = -(-l_used // tile_l)                  # cdiv
    Lpad = nt * tile_l
    tile_lp = tile_l // factor
    chunk_in = 128 * factor
    blocks_per_tile = tile_l // halo

    xg = x_ncl[:, :, :l_used].reshape(nb, Ce_in, l_used)
    if Lpad > l_used:
        xg = jnp.pad(xg, ((0, 0), (0, 0), (0, Lpad - l_used)))

    # ---- small grid-invariant operands --------------------------------------
    # pooling block: pool[t, p] = 1/factor if t // factor == p  (128*factor, 128)
    pool = (jnp.arange(chunk_in)[:, None] // factor ==
            jnp.arange(128)[None, :]).astype(jnp.float32) / factor

    eye_g = jnp.eye(g, dtype=jnp.float32)

    def bd(w):                                  # (Co, Ci) -> (g*Co, g*Ci) block-diag
        return jnp.kron(eye_g, w)

    def bd_taps(w):                             # torch (Co, Ci, 3) -> (3, g*Co, g*Ci)
        return jnp.stack([bd(w[:, :, k]) for k in range(3)])

    def bias(b):                                # (Co,) -> (g*Co, 1)
        return jnp.tile(b, g)[:, None]

    wres = bd(params["w_res"][:, :, 0]); bres = bias(params["b_res"])
    w1 = bd_taps(params["w1"]); b1 = bias(params["b1"])
    w2 = bd_taps(params["w2"]); b2 = bias(params["b2"])
    w3 = bd_taps(params["w3"]); b3 = bias(params["b3"])

    kernel = functools.partial(_downsample_kernel, halo=halo, tile_l=tile_l,
                               factor=factor)

    const2 = lambda b, lt: (0, 0)
    const3 = lambda b, lt: (0, 0, 0)

    out = pl.pallas_call(
        kernel,
        out_shape=jax.ShapeDtypeStruct((nb, Ce_out, Lpad // factor), jnp.float32),
        grid_spec=pltpu.PrefetchScalarGridSpec(
            num_scalar_prefetch=0,
            grid=(nb, nt),
            in_specs=[
                # current tile
                pl.BlockSpec((None, Ce_in, tile_l), lambda b, lt: (b, 0, lt)),
                # causal halo = last 128 samples of the previous tile (same array,
                # second view); clamped to block 0 on the first tile and zeroed
                # in-kernel by the `valid` mask.
                pl.BlockSpec((None, Ce_in, halo),
                             lambda b, lt: (b, 0,
                                            jnp.maximum(lt * blocks_per_tile - 1, 0))),
                pl.BlockSpec((chunk_in, 128), const2),
                pl.BlockSpec((Ce_out, Ce_in), const2),
                pl.BlockSpec((Ce_out, 1), const2),
                pl.BlockSpec((3, Ce_in, Ce_in), const3),
                pl.BlockSpec((Ce_in, 1), const2),
                pl.BlockSpec((3, Ce_in, Ce_in), const3),
                pl.BlockSpec((Ce_in, 1), const2),
                pl.BlockSpec((3, Ce_out, Ce_in), const3),
                pl.BlockSpec((Ce_out, 1), const2),
            ],
            out_specs=pl.BlockSpec((None, Ce_out, tile_lp), lambda b, lt: (b, 0, lt)),
        ),
        compiler_params=pltpu.CompilerParams(
            dimension_semantics=("parallel", "parallel"),
        ),
    )(xg, xg, pool, wres, bres, w1, b1, w2, b2, w3, b3)

    return out.reshape(N, C_out, Lpad // factor)[:, :, :Lp]


def downsample_reference(x_ncl, params, factor=4):
    """Pure-JAX reference replicating the PyTorch forward (for verification)."""
    def leaky(v):
        return jnp.where(v >= 0, v, _LEAKY_SLOPE * v)

    def conv1d(v, w, b, dilation=1, causal_pad=0):
        vp = jnp.pad(v, ((0, 0), (0, 0), (causal_pad, 0)))
        out = lax.conv_general_dilated(
            vp, w, window_strides=(1,), padding="VALID",
            rhs_dilation=(dilation,),
            dimension_numbers=("NCH", "OIH", "NCH"))
        return out + b[None, :, None]

    res = conv1d(x_ncl, params["w_res"], params["b_res"])
    h = leaky(x_ncl)
    h = conv1d(h, params["w1"], params["b1"], dilation=1, causal_pad=2)
    h = leaky(h)
    h = conv1d(h, params["w2"], params["b2"], dilation=2, causal_pad=4)
    h = leaky(h)
    h = conv1d(h, params["w3"], params["b3"], dilation=4, causal_pad=8)
    h = h + res
    n, c, l = h.shape
    lu = (l // factor) * factor
    return h[:, :, :lu].reshape(n, c, lu // factor, factor).mean(axis=-1)


def make_params(key, c_in, c_out):
    ks = jax.random.split(key, 8)
    s = 0.1
    return {
        "w_res": s * jax.random.normal(ks[0], (c_out, c_in, 1), jnp.float32),
        "b_res": s * jax.random.normal(ks[1], (c_out,), jnp.float32),
        "w1": s * jax.random.normal(ks[2], (c_in, c_in, 3), jnp.float32),
        "b1": s * jax.random.normal(ks[3], (c_in,), jnp.float32),
        "w2": s * jax.random.normal(ks[4], (c_in, c_in, 3), jnp.float32),
        "b2": s * jax.random.normal(ks[5], (c_in,), jnp.float32),
        "w3": s * jax.random.normal(ks[6], (c_out, c_in, 3), jnp.float32),
        "b3": s * jax.random.normal(ks[7], (c_out,), jnp.float32),
    }


if __name__ == "__main__":
    N, C_IN, C_OUT, FACTOR = 2, 4, 8, 4
    key = jax.random.PRNGKey(0)
    kx, kp, kx2 = jax.random.split(key, 3)
    params = make_params(kp, C_IN, C_OUT)

    # small shape (single L tile, heavy right padding)
    L = 16
    x = jax.random.normal(kx, (N, C_IN, L), jnp.float32)
    out = jax.block_until_ready(downsample_pallas(x, params, factor=FACTOR))
    ref = downsample_reference(x, params, factor=FACTOR)
    assert out.shape == (N, C_OUT, L // FACTOR), out.shape
    assert jnp.allclose(out, ref, atol=1e-4, rtol=1e-4), "mismatch (L=16)"

    # longer, non-aligned sequence: exercises multi-tile causal halo, right
    # zero-padding, and the AvgPool tail flooring.
    L2 = 3001
    x2 = jax.random.normal(kx2, (N, C_IN, L2), jnp.float32)
    out2 = jax.block_until_ready(downsample_pallas(x2, params, factor=FACTOR))
    ref2 = downsample_reference(x2, params, factor=FACTOR)
    assert out2.shape == (N, C_OUT, L2 // FACTOR), out2.shape
    assert jnp.allclose(out2, ref2, atol=1e-4, rtol=1e-4), "mismatch (L=3001)"

    print("KERNEL_OK")
</pallas_src>

<mosaic_0001>
module attributes {stable_mosaic.version = 11 : i64} {
  func.func @_downsample_kernel(%arg0: i32, %arg1: i32, %arg2: memref<1x8x512xf32, #tpu.memory_space<vmem>>, %arg3: memref<1x8x128xf32, #tpu.memory_space<vmem>>, %arg4: memref<512x128xf32, #tpu.memory_space<vmem>>, %arg5: memref<16x8xf32, #tpu.memory_space<vmem>>, %arg6: memref<16x1xf32, #tpu.memory_space<vmem>>, %arg7: memref<3x8x8xf32, #tpu.memory_space<vmem>>, %arg8: memref<8x1xf32, #tpu.memory_space<vmem>>, %arg9: memref<3x8x8xf32, #tpu.memory_space<vmem>>, %arg10: memref<8x1xf32, #tpu.memory_space<vmem>>, %arg11: memref<3x16x8xf32, #tpu.memory_space<vmem>>, %arg12: memref<16x1xf32, #tpu.memory_space<vmem>>, %arg13: memref<1x16x128xf32, #tpu.memory_space<vmem>>) attributes {dimension_semantics = [#tpu.dimension_semantics<parallel>, #tpu.dimension_semantics<parallel>], iteration_bounds = array<i64: 1, 1>, scalar_prefetch = 0 : i64, scratch_operands = 0 : i64, tpu.core_type = #tpu.core_type<tc>, window_params = [{transform_indices = @transform_0, window_bounds = array<i64: 1, 8, 512>}, {transform_indices = @transform_1, window_bounds = array<i64: 1, 8, 128>}, {pipeline_mode = #tpu.pipeline_mode<synchronous>, transform_indices = @transform_2, window_bounds = array<i64: 512, 128>}, {pipeline_mode = #tpu.pipeline_mode<synchronous>, transform_indices = @transform_3, window_bounds = array<i64: 16, 8>}, {pipeline_mode = #tpu.pipeline_mode<synchronous>, transform_indices = @transform_4, window_bounds = array<i64: 16, 1>}, {pipeline_mode = #tpu.pipeline_mode<synchronous>, transform_indices = @transform_5, window_bounds = array<i64: 3, 8, 8>}, {pipeline_mode = #tpu.pipeline_mode<synchronous>, transform_indices = @transform_6, window_bounds = array<i64: 8, 1>}, {pipeline_mode = #tpu.pipeline_mode<synchronous>, transform_indices = @transform_7, window_bounds = array<i64: 3, 8, 8>}, {pipeline_mode = #tpu.pipeline_mode<synchronous>, transform_indices = @transform_8, window_bounds = array<i64: 8, 1>}, {pipeline_mode = #tpu.pipeline_mode<synchronous>, transform_indices = @transform_9, window_bounds = array<i64: 3, 16, 8>}, {pipeline_mode = #tpu.pipeline_mode<synchronous>, transform_indices = @transform_10, window_bounds = array<i64: 16, 1>}, {transform_indices = @transform_11, window_bounds = array<i64: 1, 16, 128>}]} {
    %c512_i32 = arith.constant 512 : i32
    %0 = arith.muli %arg1, %c512_i32 : i32
    %c128_i32 = arith.constant 128 : i32
    %1 = arith.subi %0, %c128_i32 : i32
    %2 = tpu.iota {dimensions = array<i32: 1>} : vector<1x640xi32>
    %3 = vector.broadcast %1 : i32 to vector<1x640xi32>
    %4 = arith.addi %2, %3 : vector<1x640xi32>
    %c0_i32 = arith.constant 0 : i32
    %5 = vector.broadcast %c0_i32 : i32 to vector<1x640xi32>
    %6 = arith.cmpi sge, %4, %5 : vector<1x640xi32>
    %c0 = arith.constant 0 : index
    %c0_0 = arith.constant 0 : index
    %c0_1 = arith.constant 0 : index
    %7 = vector.load %arg3[%c0, %c0_0, %c0_1] : memref<1x8x128xf32, #tpu.memory_space<vmem>>, vector<1x8x128xf32>
    %8 = vector.shape_cast %7 : vector<1x8x128xf32> to vector<8x128xf32>
    %c0_2 = arith.constant 0 : index
    %c0_3 = arith.constant 0 : index
    %c0_4 = arith.constant 0 : index
    %9 = vector.load %arg2[%c0_2, %c0_3, %c0_4] : memref<1x8x512xf32, #tpu.memory_space<vmem>>, vector<1x8x512xf32>
    %10 = vector.shape_cast %9 : vector<1x8x512xf32> to vector<8x512xf32>
    %11 = tpu.concatenate %8, %10 in 1 : vector<8x128xf32>, vector<8x512xf32> -> vector<8x640xf32>
    %cst = arith.constant 0.000000e+00 : f32
    %12 = vector.shape_cast %6 : vector<1x640xi1> to vector<1x640xi1>
    %13 = vector.broadcast %12 : vector<1x640xi1> to vector<8x640xi1>
    %14 = vector.broadcast %cst : f32 to vector<8x640xf32>
    %15 = arith.select %13, %11, %14 : vector<8x640xi1>, vector<8x640xf32>
    %c0_5 = arith.constant 0 : index
    %c0_6 = arith.constant 0 : index
    %16 = vector.load %arg5[%c0_5, %c0_6] : memref<16x8xf32, #tpu.memory_space<vmem>>, vector<16x8xf32>
    %c0_7 = arith.constant 0 : index
    %c0_8 = arith.constant 0 : index
    %c0_9 = arith.constant 0 : index
    %17 = vector.load %arg2[%c0_7, %c0_8, %c0_9] : memref<1x8x512xf32, #tpu.memory_space<vmem>>, vector<1x8x512xf32>
    %18 = vector.shape_cast %17 : vector<1x8x512xf32> to vector<8x512xf32>
    %cst_10 = arith.constant dense<0.000000e+00> : vector<16x512xf32>
    %19 = tpu.matmul %16, %18, %cst_10 {dimension_numbers = #tpu.dot_dimension_numbers<[1], [0], [0], [1], [0, 0, 1, 1], [], []>} : vector<16x8xf32>, vector<8x512xf32>, vector<16x512xf32> -> vector<16x512xf32>
    %c0_11 = arith.constant 0 : index
    %c0_12 = arith.constant 0 : index
    %20 = vector.load %arg6[%c0_11, %c0_12] : memref<16x1xf32, #tpu.memory_space<vmem>>, vector<16x1xf32>
    %21 = vector.broadcast %20 : vector<16x1xf32> to vector<16x512xf32>
    %22 = arith.addf %19, %21 : vector<16x512xf32>
    %cst_13 = arith.constant 0.000000e+00 : f32
    %23 = vector.broadcast %cst_13 : f32 to vector<8x640xf32>
    %24 = arith.cmpf oge, %15, %23 : vector<8x640xf32>
    %cst_14 = arith.constant 1.000000e-01 : f32
    %25 = vector.broadcast %cst_14 : f32 to vector<8x640xf32>
    %26 = arith.mulf %25, %15 : vector<8x640xf32>
    %27 = arith.select %24, %15, %26 : vector<8x640xi1>, vector<8x640xf32>
    %c0_15 = arith.constant 0 : index
    %c0_16 = arith.constant 0 : index
    %c0_17 = arith.constant 0 : index
    %28 = vector.load %arg7[%c0_15, %c0_16, %c0_17] : memref<3x8x8xf32, #tpu.memory_space<vmem>>, vector<1x8x8xf32>
    %29 = vector.shape_cast %28 : vector<1x8x8xf32> to vector<8x8xf32>
    %c2_i32 = arith.constant 2 : i32
    %30 = tpu.dynamic_rotate %27 by %c2_i32 dim 1 : vector<8x640xf32>, i32 -> vector<8x640xf32>
    %cst_18 = arith.constant dense<0.000000e+00> : vector<8x640xf32>
    %31 = tpu.matmul %29, %30, %cst_18 {dimension_numbers = #tpu.dot_dimension_numbers<[1], [0], [0], [1], [0, 0, 1, 1], [], []>} : vector<8x8xf32>, vector<8x640xf32>, vector<8x640xf32> -> vector<8x640xf32>
    %c1 = arith.constant 1 : index
    %c0_19 = arith.constant 0 : index
    %c0_20 = arith.constant 0 : index
    %32 = vector.load %arg7[%c1, %c0_19, %c0_20] : memref<3x8x8xf32, #tpu.memory_space<vmem>>, vector<1x8x8xf32>
    %33 = vector.shape_cast %32 : vector<1x8x8xf32> to vector<8x8xf32>
    %c1_i32 = arith.constant 1 : i32
    %34 = tpu.dynamic_rotate %27 by %c1_i32 dim 1 : vector<8x640xf32>, i32 -> vector<8x640xf32>
    %cst_21 = arith.constant dense<0.000000e+00> : vector<8x640xf32>
    %35 = tpu.matmul %33, %34, %cst_21 {dimension_numbers = #tpu.dot_dimension_numbers<[1], [0], [0], [1], [0, 0, 1, 1], [], []>} : vector<8x8xf32>, vector<8x640xf32>, vector<8x640xf32> -> vector<8x640xf32>
    %36 = arith.addf %31, %35 : vector<8x640xf32>
    %c2 = arith.constant 2 : index
    %c0_22 = arith.constant 0 : index
    %c0_23 = arith.constant 0 : index
    %37 = vector.load %arg7[%c2, %c0_22, %c0_23] : memref<3x8x8xf32, #tpu.memory_space<vmem>>, vector<1x8x8xf32>
    %38 = vector.shape_cast %37 : vector<1x8x8xf32> to vector<8x8xf32>
    %cst_24 = arith.constant dense<0.000000e+00> : vector<8x640xf32>
    %39 = tpu.matmul %38, %27, %cst_24 {dimension_numbers = #tpu.dot_dimension_numbers<[1], [0], [0], [1], [0, 0, 1, 1], [], []>} : vector<8x8xf32>, vector<8x640xf32>, vector<8x640xf32> -> vector<8x640xf32>
    %40 = arith.addf %36, %39 : vector<8x640xf32>
    %c0_25 = arith.constant 0 : index
    %c0_26 = arith.constant 0 : index
    %41 = vector.load %arg8[%c0_25, %c0_26] : memref<8x1xf32, #tpu.memory_space<vmem>>, vector<8x1xf32>
    %42 = vector.broadcast %41 : vector<8x1xf32> to vector<8x640xf32>
    %43 = arith.addf %40, %42 : vector<8x640xf32>
    %cst_27 = arith.constant 0.000000e+00 : f32
    %44 = vector.shape_cast %6 : vector<1x640xi1> to vector<1x640xi1>
    %45 = vector.broadcast %44 : vector<1x640xi1> to vector<8x640xi1>
    %46 = vector.broadcast %cst_27 : f32 to vector<8x640xf32>
    %47 = arith.select %45, %43, %46 : vector<8x640xi1>, vector<8x640xf32>
    %cst_28 = arith.constant 0.000000e+00 : f32
    %48 = vector.broadcast %cst_28 : f32 to vector<8x640xf32>
    %49 = arith.cmpf oge, %47, %48 : vector<8x640xf32>
    %cst_29 = arith.constant 1.000000e-01 : f32
    %50 = vector.broadcast %cst_29 : f32 to vector<8x640xf32>
    %51 = arith.mulf %50, %47 : vector<8x640xf32>
    %52 = arith.select %49, %47, %51 : vector<8x640xi1>, vector<8x640xf32>
    %c0_30 = arith.constant 0 : index
    %c0_31 = arith.constant 0 : index
    %c0_32 = arith.constant 0 : index
    %53 = vector.load %arg9[%c0_30, %c0_31, %c0_32] : memref<3x8x8xf32, #tpu.memory_space<vmem>>, vector<1x8x8xf32>
    %54 = vector.shape_cast %53 : vector<1x8x8xf32> to vector<8x8xf32>
    %c4_i32 = arith.constant 4 : i32
    %55 = tpu.dynamic_rotate %52 by %c4_i32 dim 1 : vector<8x640xf32>, i32 -> vector<8x640xf32>
    %cst_33 = arith.constant dense<0.000000e+00> : vector<8x640xf32>
    %56 = tpu.matmul %54, %55, %cst_33 {dimension_numbers = #tpu.dot_dimension_numbers<[1], [0], [0], [1], [0, 0, 1, 1], [], []>} : vector<8x8xf32>, vector<8x640xf32>, vector<8x640xf32> -> vector<8x640xf32>
    %c1_34 = arith.constant 1 : index
    %c0_35 = arith.constant 0 : index
    %c0_36 = arith.constant 0 : index
    %57 = vector.load %arg9[%c1_34, %c0_35, %c0_36] : memref<3x8x8xf32, #tpu.memory_space<vmem>>, vector<1x8x8xf32>
    %58 = vector.shape_cast %57 : vector<1x8x8xf32> to vector<8x8xf32>
    %c2_i32_37 = arith.constant 2 : i32
    %59 = tpu.dynamic_rotate %52 by %c2_i32_37 dim 1 : vector<8x640xf32>, i32 -> vector<8x640xf32>
    %cst_38 = arith.constant dense<0.000000e+00> : vector<8x640xf32>
    %60 = tpu.matmul %58, %59, %cst_38 {dimension_numbers = #tpu.dot_dimension_numbers<[1], [0], [0], [1], [0, 0, 1, 1], [], []>} : vector<8x8xf32>, vector<8x640xf32>, vector<8x640xf32> -> vector<8x640xf32>
    %61 = arith.addf %56, %60 : vector<8x640xf32>
    %c2_39 = arith.constant 2 : index
    %c0_40 = arith.constant 0 : index
    %c0_41 = arith.constant 0 : index
    %62 = vector.load %arg9[%c2_39, %c0_40, %c0_41] : memref<3x8x8xf32, #tpu.memory_space<vmem>>, vector<1x8x8xf32>
    %63 = vector.shape_cast %62 : vector<1x8x8xf32> to vector<8x8xf32>
    %cst_42 = arith.constant dense<0.000000e+00> : vector<8x640xf32>
    %64 = tpu.matmul %63, %52, %cst_42 {dimension_numbers = #tpu.dot_dimension_numbers<[1], [0], [0], [1], [0, 0, 1, 1], [], []>} : vector<8x8xf32>, vector<8x640xf32>, vector<8x640xf32> -> vector<8x640xf32>
    %65 = arith.addf %61, %64 : vector<8x640xf32>
    %c0_43 = arith.constant 0 : index
    %c0_44 = arith.constant 0 : index
    %66 = vector.load %arg10[%c0_43, %c0_44] : memref<8x1xf32, #tpu.memory_space<vmem>>, vector<8x1xf32>
    %67 = vector.broadcast %66 : vector<8x1xf32> to vector<8x640xf32>
    %68 = arith.addf %65, %67 : vector<8x640xf32>
    %cst_45 = arith.constant 0.000000e+00 : f32
    %69 = vector.shape_cast %6 : vector<1x640xi1> to vector<1x640xi1>
    %70 = vector.broadcast %69 : vector<1x640xi1> to vector<8x640xi1>
    %71 = vector.broadcast %cst_45 : f32 to vector<8x640xf32>
    %72 = arith.select %70, %68, %71 : vector<8x640xi1>, vector<8x640xf32>
    %cst_46 = arith.constant 0.000000e+00 : f32
    %73 = vector.broadcast %cst_46 : f32 to vector<8x640xf32>
    %74 = arith.cmpf oge, %72, %73 : vector<8x640xf32>
    %cst_47 = arith.constant 1.000000e-01 : f32
    %75 = vector.broadcast %cst_47 : f32 to vector<8x640xf32>
    %76 = arith.mulf %75, %72 : vector<8x640xf32>
    %77 = arith.select %74, %72, %76 : vector<8x640xi1>, vector<8x640xf32>
    %c0_48 = arith.constant 0 : index
    %c0_49 = arith.constant 0 : index
    %c0_50 = arith.constant 0 : index
    %78 = vector.load %arg11[%c0_48, %c0_49, %c0_50] : memref<3x16x8xf32, #tpu.memory_space<vmem>>, vector<1x16x8xf32>
    %79 = vector.shape_cast %78 : vector<1x16x8xf32> to vector<16x8xf32>
    %c8_i32 = arith.constant 8 : i32
    %80 = tpu.dynamic_rotate %77 by %c8_i32 dim 1 : vector<8x640xf32>, i32 -> vector<8x640xf32>
    %cst_51 = arith.constant dense<0.000000e+00> : vector<16x640xf32>
    %81 = tpu.matmul %79, %80, %cst_51 {dimension_numbers = #tpu.dot_dimension_numbers<[1], [0], [0], [1], [0, 0, 1, 1], [], []>} : vector<16x8xf32>, vector<8x640xf32>, vector<16x640xf32> -> vector<16x640xf32>
    %c1_52 = arith.constant 1 : index
    %c0_53 = arith.constant 0 : index
    %c0_54 = arith.constant 0 : index
    %82 = vector.load %arg11[%c1_52, %c0_53, %c0_54] : memref<3x16x8xf32, #tpu.memory_space<vmem>>, vector<1x16x8xf32>
    %83 = vector.shape_cast %82 : vector<1x16x8xf32> to vector<16x8xf32>
    %c4_i32_55 = arith.constant 4 : i32
    %84 = tpu.dynamic_rotate %77 by %c4_i32_55 dim 1 : vector<8x640xf32>, i32 -> vector<8x640xf32>
    %cst_56 = arith.constant dense<0.000000e+00> : vector<16x640xf32>
    %85 = tpu.matmul %83, %84, %cst_56 {dimension_numbers = #tpu.dot_dimension_numbers<[1], [0], [0], [1], [0, 0, 1, 1], [], []>} : vector<16x8xf32>, vector<8x640xf32>, vector<16x640xf32> -> vector<16x640xf32>
    %86 = arith.addf %81, %85 : vector<16x640xf32>
    %c2_57 = arith.constant 2 : index
    %c0_58 = arith.constant 0 : index
    %c0_59 = arith.constant 0 : index
    %87 = vector.load %arg11[%c2_57, %c0_58, %c0_59] : memref<3x16x8xf32, #tpu.memory_space<vmem>>, vector<1x16x8xf32>
    %88 = vector.shape_cast %87 : vector<1x16x8xf32> to vector<16x8xf32>
    %cst_60 = arith.constant dense<0.000000e+00> : vector<16x640xf32>
    %89 = tpu.matmul %88, %77, %cst_60 {dimension_numbers = #tpu.dot_dimension_numbers<[1], [0], [0], [1], [0, 0, 1, 1], [], []>} : vector<16x8xf32>, vector<8x640xf32>, vector<16x640xf32> -> vector<16x640xf32>
    %90 = arith.addf %86, %89 : vector<16x640xf32>
    %c0_61 = arith.constant 0 : index
    %c0_62 = arith.constant 0 : index
    %91 = vector.load %arg12[%c0_61, %c0_62] : memref<16x1xf32, #tpu.memory_space<vmem>>, vector<16x1xf32>
    %92 = vector.broadcast %91 : vector<16x1xf32> to vector<16x640xf32>
    %93 = arith.addf %90, %92 : vector<16x640xf32>
    %94 = vector.extract_strided_slice %93 {offsets = [0, 128], sizes = [16, 512], strides = [1, 1]} : vector<16x640xf32> to vector<16x512xf32>
    %95 = arith.addf %94, %22 : vector<16x512xf32>
    %c0_63 = arith.constant 0 : index
    %c0_64 = arith.constant 0 : index
    %96 = vector.load %arg4[%c0_63, %c0_64] : memref<512x128xf32, #tpu.memory_space<vmem>>, vector<512x128xf32>
    %cst_65 = arith.constant dense<0.000000e+00> : vector<16x128xf32>
    %97 = tpu.matmul %95, %96, %cst_65 {dimension_numbers = #tpu.dot_dimension_numbers<[1], [0], [0], [1], [0, 0, 1, 1], [], []>} : vector<16x512xf32>, vector<512x128xf32>, vector<16x128xf32> -> vector<16x128xf32>
    %c0_66 = arith.constant 0 : index
    %c0_67 = arith.constant 0 : index
    %c0_68 = arith.constant 0 : index
    %98 = vector.load %arg13[%c0_66, %c0_67, %c0_68] : memref<1x16x128xf32, #tpu.memory_space<vmem>>, vector<1x16x128xf32>
    %99 = vector.shape_cast %98 : vector<1x16x128xf32> to vector<16x128xf32>
    %100 = vector.shape_cast %97 : vector<16x128xf32> to vector<1x16x128xf32>
    tpu.vector_store %arg13[%c0_66, %c0_67, %c0_68], %100 {strides = array<i32>} : memref<1x16x128xf32, #tpu.memory_space<vmem>>, vector<1x16x128xf32>,
    return
  }
  func.func @transform_0(%arg0: i32, %arg1: i32) -> (i32, i32, i32) {
    %c0_i32 = arith.constant 0 : i32
    %c0_i32_0 = arith.constant 0 : i32
    return %arg0, %c0_i32, %arg1 : i32, i32, i32
  }
  func.func @transform_1(%arg0: i32, %arg1: i32) -> (i32, i32, i32) {
    %c4_i32 = arith.constant 4 : i32
    %0 = arith.muli %arg1, %c4_i32 : i32
    %c1_i32 = arith.constant 1 : i32
    %1 = arith.subi %0, %c1_i32 : i32
    %c0_i32 = arith.constant 0 : i32
    %2 = arith.maxsi %1, %c0_i32 : i32
    %c0_i32_0 = arith.constant 0 : i32
    %c0_i32_1 = arith.constant 0 : i32
    return %arg0, %c0_i32_0, %2 : i32, i32, i32
  }
  func.func @transform_2(%arg0: i32, %arg1: i32) -> (i32, i32) {
    %c0_i32 = arith.constant 0 : i32
    %c0_i32_0 = arith.constant 0 : i32
    %c0_i32_1 = arith.constant 0 : i32
    return %c0_i32, %c0_i32_0 : i32, i32
  }
  func.func @transform_3(%arg0: i32, %arg1: i32) -> (i32, i32) {
    %c0_i32 = arith.constant 0 : i32
    %c0_i32_0 = arith.constant 0 : i32
    %c0_i32_1 = arith.constant 0 : i32
    return %c0_i32, %c0_i32_0 : i32, i32
  }
  func.func @transform_4(%arg0: i32, %arg1: i32) -> (i32, i32) {
    %c0_i32 = arith.constant 0 : i32
    %c0_i32_0 = arith.constant 0 : i32
    %c0_i32_1 = arith.constant 0 : i32
    return %c0_i32, %c0_i32_0 : i32, i32
  }
  func.func @transform_5(%arg0: i32, %arg1: i32) -> (i32, i32, i32) {
    %c0_i32 = arith.constant 0 : i32
    %c0_i32_0 = arith.constant 0 : i32
    %c0_i32_1 = arith.constant 0 : i32
    %c0_i32_2 = arith.constant 0 : i32
    return %c0_i32, %c0_i32_0, %c0_i32_1 : i32, i32, i32
  }
  func.func @transform_6(%arg0: i32, %arg1: i32) -> (i32, i32) {
    %c0_i32 = arith.constant 0 : i32
    %c0_i32_0 = arith.constant 0 : i32
    %c0_i32_1 = arith.constant 0 : i32
    return %c0_i32, %c0_i32_0 : i32, i32
  }
  func.func @transform_7(%arg0: i32, %arg1: i32) -> (i32, i32, i32) {
    %c0_i32 = arith.constant 0 : i32
    %c0_i32_0 = arith.constant 0 : i32
    %c0_i32_1 = arith.constant 0 : i32
    %c0_i32_2 = arith.constant 0 : i32
    return %c0_i32, %c0_i32_0, %c0_i32_1 : i32, i32, i32
  }
  func.func @transform_8(%arg0: i32, %arg1: i32) -> (i32, i32) {
    %c0_i32 = arith.constant 0 : i32
    %c0_i32_0 = arith.constant 0 : i32
    %c0_i32_1 = arith.constant 0 : i32
    return %c0_i32, %c0_i32_0 : i32, i32
  }
  func.func @transform_9(%arg0: i32, %arg1: i32) -> (i32, i32, i32) {
    %c0_i32 = arith.constant 0 : i32
    %c0_i32_0 = arith.constant 0 : i32
    %c0_i32_1 = arith.constant 0 : i32
    %c0_i32_2 = arith.constant 0 : i32
    return %c0_i32, %c0_i32_0, %c0_i32_1 : i32, i32, i32
  }
  func.func @transform_10(%arg0: i32, %arg1: i32) -> (i32, i32) {
    %c0_i32 = arith.constant 0 : i32
    %c0_i32_0 = arith.constant 0 : i32
    %c0_i32_1 = arith.constant 0 : i32
    return %c0_i32, %c0_i32_0 : i32, i32
  }
  func.func @transform_11(%arg0: i32, %arg1: i32) -> (i32, i32, i32) {
    %c0_i32 = arith.constant 0 : i32
    %c0_i32_0 = arith.constant 0 : i32
    return %arg0, %c0_i32, %arg1 : i32, i32, i32
  }
}

</mosaic_0001>

<llo_original>
// kernel: tpu_custom_call.1
$region0: #{tpu_custom_call.1}
  #allocation0 [shape = 'u32[]', space=smem, size = 0x4, offset = 0x4, fixed_abs, tag = 'smem constant byte address 0x4 - core index']
  #allocation1 [shape = 'u32[144,128]{1,0:T(1,128)}', space=vmem, size = 0x12000, scoped, tag = 'internal scratch']
  %s0 = inlined_call_operand.vmem [shape: f32[1,8,512], index: 0, kind: input, shape index: {}]
  %s1 = inlined_call_operand.vmem [shape: f32[1,8,512], index: 1, kind: input, shape index: {}]
  %s2 = inlined_call_operand.hbm [shape: f32[512,128], index: 2, kind: input, shape index: {}]
  %s3 = inlined_call_operand.vmem [shape: f32[16,8], index: 3, kind: input, shape index: {}]
  %s4 = inlined_call_operand.vmem [shape: f32[16,1], index: 4, kind: input, shape index: {}]
  %s5 = inlined_call_operand.vmem [shape: f32[3,8,8], index: 5, kind: input, shape index: {}]
  %s6 = inlined_call_operand.vmem [shape: f32[8,1], index: 6, kind: input, shape index: {}]
  %s7 = inlined_call_operand.vmem [shape: f32[3,8,8], index: 7, kind: input, shape index: {}]
  %s8 = inlined_call_operand.vmem [shape: f32[8,1], index: 8, kind: input, shape index: {}]
  %s9 = inlined_call_operand.vmem [shape: f32[3,16,8], index: 9, kind: input, shape index: {}]
  %s10 = inlined_call_operand.vmem [shape: f32[16,1], index: 10, kind: input, shape index: {}]
  %s11 = inlined_call_operand.hbm [shape: f32[1,16,128], index: 11, kind: output, shape index: {}]
  %s12 = sld [smem:[#allocation0]]
  $region58: #{tpu_custom_call.1} parent=0
    _
  %s14 = ssub.s32 1, %s12
  %s15 = scalar_select 0, %s14, %s12
  $region1: #{tpu_custom_call.1} parent=0
    #allocation2 [shape = 'u8[262144]{0}', space=vmem, size = 0x40000, scoped, tag = 'input window, operand 2, single buffered']
    #allocation3 [shape = 's32[1]{0}', space=sflag, size = 0x4, scoped, tag = 'scoped memory for tpu_custom_call.1']
    #allocation4 [shape = 's32[1]{0}', space=sflag, size = 0x4, scoped, tag = 'scoped memory for tpu_custom_call.1']
    #allocation5 [shape = 'u8[8192]{0}', space=vmem, size = 0x2000, scoped, tag = 'output window, operand 0, single buffered']
    %16 = vsyncpa [#allocation3], 0
    %17 = vsyncpa [#allocation4], 0
    // Predicated region
    $region2: #{tpu_custom_call.1} parent=1 // pred_check
      _
    $region3: #{tpu_custom_call.1} parent=1 // pred_check_branch
      %19 = sbr.rel (0) target = $region5
    $region4: #{tpu_custom_call.1} parent=1 // pred_region
      _
    $region5: #{tpu_custom_call.1} parent=1 // pred_fallthru
      _
    // Predicated region
    $region6: #{tpu_custom_call.1} parent=1 // pred_check
      _
    $region7: #{tpu_custom_call.1} parent=1 // pred_check_branch
      %21 = sbr.rel (0) target = $region9
    $region8: #{tpu_custom_call.1} parent=1 // pred_region
      %s22 = smul.u32 0, 4
      %s23 = ssub.s32 %s22, 1
      %p24 = scmp.gt.s32.totalorder %s23, 0
      %s25 = scalar_select %p24, %s23, 0
      %p26 = scmp.lt.s32.totalorder %s25, 3
      %s27 = scalar_select %p26, %s25, 3
      %s28 = smul.addr %s27, 8
      %s29 = scalar_lea.vmem %s1, %s28
      %s30 = smul.u32 0, 4
      %s31 = ssub.s32 %s30, 1
      %p32 = scmp.gt.s32.totalorder %s31, 0
      %s33 = scalar_select %p32, %s31, 0
    $region9: #{tpu_custom_call.1} parent=1 // pred_fallthru
      _
    // Predicated region
    $region10: #{tpu_custom_call.1} parent=1 // pred_check
      _
    $region11: #{tpu_custom_call.1} parent=1 // pred_check_branch
      %35 = sbr.rel (0) target = $region13
    $region12: #{tpu_custom_call.1} parent=1 // pred_region
      %s37 = ssub.s32 8192, 8192
      %38 = vsyncadd [#allocation3], %s37
      %s39 = sshll.u32 [#allocation2], 4
      %s40 = int_to_ptr.vmem [resolvable:$true] %s39
      %45 = dma.hbm_to_vmem [thread:$0]  %s2, 8192, %s40, [#allocation3], 128, 128, 8
    $region13: #{tpu_custom_call.1} parent=1 // pred_fallthru
      _
    // Predicated region
    $region14: #{tpu_custom_call.1} parent=1 // pred_check
      _
    $region15: #{tpu_custom_call.1} parent=1 // pred_check_branch
      %47 = sbr.rel (0) target = $region17
    $region16: #{tpu_custom_call.1} parent=1 // pred_region
      _
    $region17: #{tpu_custom_call.1} parent=1 // pred_fallthru
      _
    // Predicated region
    $region18: #{tpu_custom_call.1} parent=1 // pred_check
      _
    $region19: #{tpu_custom_call.1} parent=1 // pred_check_branch
      %49 = sbr.rel (0) target = $region21
    $region20: #{tpu_custom_call.1} parent=1 // pred_region
      _
    $region21: #{tpu_custom_call.1} parent=1 // pred_fallthru
      _
    // Predicated region
    $region22: #{tpu_custom_call.1} parent=1 // pred_check
      _
    $region23: #{tpu_custom_call.1} parent=1 // pred_check_branch
      %51 = sbr.rel (0) target = $region25
    $region24: #{tpu_custom_call.1} parent=1 // pred_region
      _
    $region25: #{tpu_custom_call.1} parent=1 // pred_fallthru
      _
    // Predicated region
    $region26: #{tpu_custom_call.1} parent=1 // pred_check
      _
    $region27: #{tpu_custom_call.1} parent=1 // pred_check_branch
      %53 = sbr.rel (0) target = $region29
    $region28: #{tpu_custom_call.1} parent=1 // pred_region
      _
    $region29: #{tpu_custom_call.1} parent=1 // pred_fallthru
      _
    // Predicated region
    $region30: #{tpu_custom_call.1} parent=1 // pred_check
      _
    $region31: #{tpu_custom_call.1} parent=1 // pred_check_branch
      %55 = sbr.rel (0) target = $region33
    $region32: #{tpu_custom_call.1} parent=1 // pred_region
      _
    $region33: #{tpu_custom_call.1} parent=1 // pred_fallthru
      _
    // Predicated region
    $region34: #{tpu_custom_call.1} parent=1 // pred_check
      _
    $region35: #{tpu_custom_call.1} parent=1 // pred_check_branch
      %57 = sbr.rel (0) target = $region37
    $region36: #{tpu_custom_call.1} parent=1 // pred_region
      _
    $region37: #{tpu_custom_call.1} parent=1 // pred_fallthru
      _
    // Predicated region
    $region38: #{tpu_custom_call.1} parent=1 // pred_check
      _
    $region39: #{tpu_custom_call.1} parent=1 // pred_check_branch
      %59 = sbr.rel (0) target = $region41
    $region40: #{tpu_custom_call.1} parent=1 // pred_region
      _
    $region41: #{tpu_custom_call.1} parent=1 // pred_fallthru
      _
    // Predicated region
    $region42: #{tpu_custom_call.1} parent=1 // pred_check
      _
    $region43: #{tpu_custom_call.1} parent=1 // pred_check_branch
      %61 = sbr.rel (0) target = $region45
    $region44: #{tpu_custom_call.1} parent=1 // pred_region
      _
    $region45: #{tpu_custom_call.1} parent=1 // pred_fallthru
      _
    // Predicated region
    $region46: #{tpu_custom_call.1} parent=1 // pred_check
      _
    $region47: #{tpu_custom_call.1} parent=1 // pred_check_branch
      %63 = sbr.rel (0) target = $region49
    $region48: #{tpu_custom_call.1} parent=1 // pred_region
      %64 = dma.done [#allocation3], 8192
    $region49: #{tpu_custom_call.1} parent=1 // pred_fallthru
      _
    %s65 = smul.u32 0, 4
    %s66 = ssub.s32 %s65, 1
    %p67 = scmp.gt.s32.totalorder %s66, 0
    %s68 = scalar_select %p67, %s66, 0
    %p69 = scmp.lt.s32.totalorder %s68, 3
    %s70 = scalar_select %p69, %s68, 3
    %s71 = smul.addr %s70, 8
    %s72 = scalar_lea.vmem %s1, %s71
    %s73 = smul.u32 0, 4
    %s74 = ssub.s32 %s73, 1
    %p75 = scmp.gt.s32.totalorder %s74, 0
    %s76 = scalar_select %p75, %s74, 0
    %p77 = scmp.lt.s32.totalorder %s76, 3
    %s78 = scalar_select %p77, %s76, 3
    %s79 = smul.addr %s78, 8
    %s80 = scalar_lea.vmem %s1, %s79
    %s81 = smul.u32 0, 4
    %s82 = ssub.s32 %s81, 1
    %p83 = scmp.gt.s32.totalorder %s82, 0
    %s84 = scalar_select %p83, %s82, 0
    %s85 = smul.u32 0, 512
    %s86 = ssub.s32 %s85, 128
    %v87 = vlaneseq
    %v88 = vand.u32 %v87, 127
    %v89 = vadd.s32 %v88, 128
    %v90 = vadd.s32 %v88, 256
    %v91 = vadd.s32 %v88, 384
    %v92 = vadd.s32 %v88, 512
    %v93 = vstv %s86
    %v94 = vadd.s32 %v88, %v93
    %v95 = vadd.s32 %v89, %v93
    %v96 = vadd.s32 %v90, %v93
    %v97 = vadd.s32 %v91, %v93
    %v98 = vadd.s32 %v92, %v93
    %vm99 = vcmp.ge.s32.totalorder %v94, 0
    %vm100 = vcmp.ge.s32.totalorder %v95, 0
    %vm101 = vcmp.ge.s32.totalorder %v96, 0
    %vm102 = vcmp.ge.s32.totalorder %v97, 0
    %vm103 = vcmp.ge.s32.totalorder %v98, 0
    %v104 = vld [vmem:[%s80] sm:$0xff]
    %v105 = vld [vmem:[%s0] sm:$0xff]
    %v106 = vld [vmem:[%s0 + $0x8] sm:$0xff]
    %v107 = vld [vmem:[%s0 + $0x10] sm:$0xff]
    %v108 = vld [vmem:[%s0 + $0x18] sm:$0xff]
    %v109 = vsel %vm99, 1, 0
    %v110 = vsel %vm100, 1, 0
    %v111 = vsel %vm101, 1, 0
    %v112 = vsel %vm102, 1, 0
    %v113 = vsel %vm103, 1, 0
    %vm114 = vcmp.eq.s32.totalorder %v109, 1
    %vm115 = vcmp.eq.s32.totalorder %v110, 1
    %vm116 = vcmp.eq.s32.totalorder %v111, 1
    %vm117 = vcmp.eq.s32.totalorder %v112, 1
    %vm118 = vcmp.eq.s32.totalorder %v113, 1
    %v119 = vsel %vm114, %v104, 0.0
    %v120 = vsel %vm115, %v105, 0.0
    %v121 = vsel %vm116, %v106, 0.0
    %v122 = vsel %vm117, %v107, 0.0
    %v123 = vsel %vm118, %v108, 0.0
    %v124 = vld [vmem:[%s3] sm:$0xff]
    %v125 = vld [vmem:[%s3 + $0x8] sm:$0xff]
    %v126 = vld [vmem:[%s4] sm:$0xff]
    %v127 = vld [vmem:[%s4 + $0x8] sm:$0xff]
    %129 = vset.pattern.permute.xlu0 0
    %130 = vperm.xlu0 %129, %v126
    %v131 = vpop.permute.xlu0 %130
    %134 = vset.pattern.permute.xlu0 0
    %135 = vperm.xlu0 %134, %v127
    %v136 = vpop.permute.xlu0 %135
    %vm138 = vcmask 64512
    %v140 = vsel %vm138, %v124, 0
    %v143 = vsel %vm138, %v125, 0
    %145 = vmatprep.subr.mxu0 %v106
    %146 = vmatpush1.msra.mxu0 %v105
    %147 = vmatprep.subr.mxu0 0.0
    %148 = vmatpush1.msra.mxu0 0.0
    %149 = vmatprep.subr.mxu0 0.0
    %150 = vmatpush1.msra.mxu0 0.0
    %151 = vmatprep.subr.mxu0 0.0
    %152 = vmatpush1.msra.mxu0 0.0
    %153 = vmatprep.subr.mxu0 0.0
    %154 = vmatpush1.msra.mxu0 0.0
    %155 = vmatprep.subr.mxu0 0.0
    %156 = vmatpush1.msra.mxu0 0.0
    %157 = vmatprep.subr.mxu0 0.0
    %158 = vmatpush1.msra.mxu0 0.0
    %159 = vmatprep.subr.mxu0 0.0
    %160 = vmatpush1.msra.mxu0 0.0
    %161 = vmatprep.subr.mxu0 0.0
    %162 = vmatpush1.msra.mxu0 0.0
    %163 = vmatprep.subr.mxu0 0.0
    %164 = vmatpush1.msra.mxu0 0.0
    %165 = vmatprep.subr.mxu0 0.0
    %166 = vmatpush1.msra.mxu0 0.0
    %167 = vmatprep.subr.mxu0 0.0
    %168 = vmatpush1.msra.mxu0 0.0
    %169 = vmatprep.subr.mxu0 0.0
    %170 = vmatpush1.msra.mxu0 0.0
    %171 = vmatprep.subr.mxu0 0.0
    %172 = vmatpush1.msra.mxu0 0.0
    %173 = vmatprep.subr.mxu0 0.0
    %174 = vmatpush1.msra.mxu0 0.0
    %175 = vmatprep.subr.mxu0 0.0
    %176 = vmatpush1.msra.mxu0 0.0
    %177 = vmatprep.subr.mxu0 0.0
    %178 = vmatpush1.msra.mxu0 0.0
    %179 = vmatprep.subr.mxu0 0.0
    %180 = vmatpush1.msra.mxu0 0.0
    %181 = vmatprep.subr.mxu0 0.0
    %182 = vmatpush1.msra.mxu0 0.0
    %183 = vmatprep.subr.mxu0 0.0
    %184 = vmatpush1.msra.mxu0 0.0
    %185 = vmatprep.subr.mxu0 0.0
    %186 = vmatpush1.msra.mxu0 0.0
    %187 = vmatprep.subr.mxu0 0.0
    %188 = vmatpush1.msra.mxu0 0.0
    %189 = vmatprep.subr.mxu0 0.0
    %190 = vmatpush1.msra.mxu0 0.0
    %191 = vmatprep.subr.mxu0 0.0
    %192 = vmatpush1.msra.mxu0 0.0
    %193 = vmatprep.subr.mxu0 0.0
    %194 = vmatpush1.msra.mxu0 0.0
    %195 = vmatprep.subr.mxu0 0.0
    %196 = vmatpush1.msra.mxu0 0.0
    %197 = vmatprep.subr.mxu0 0.0
    %198 = vmatpush1.msra.mxu0 0.0
    %199 = vmatprep.subr.mxu0 0.0
    %200 = vmatpush1.msra.mxu0 0.0
    %201 = vmatprep.subr.mxu0 0.0
    %202 = vmatpush1.msra.mxu0 0.0
    %203 = vmatprep.subr.mxu0 0.0
    %204 = vmatpush1.msra.mxu0 0.0
    %205 = vmatprep.subr.mxu0 0.0
    %206 = vmatpush1.msra.mxu0 0.0
    %207 = vmatprep.subr.mxu0 0.0
    %208 = vmatpush1.msra.mxu0 0.0
    %209 = vmatprep.mubr.f32.mxu0 0.0
    %210 = vmatmul.mubr.f32.gmra.mrb[0].mxu0 %v140
    %v211 = vpop.f32.mrb[0].mxu0
    %v212 = vadd.f32 %v131, %v211
    %v213 = vpop.f32.mrb[0].mxu0
    %v214 = vadd.f32 %v131, %v213
    %215 = vmatprep.mubr.f32.mxu0 0.0
    %216 = vmatmul.mubr.f32.gmra.mrb[0].mxu0 %v143
    %v217 = vpop.f32.mrb[0].mxu0
    %v218 = vadd.f32 %v136, %v217
    %v219 = vpop.f32.mrb[0].mxu0
    %v220 = vadd.f32 %v136, %v219
    %221 = vdwg.mxu0
    %222 = vmatprep.subr.mxu0 %v108
    %223 = vmatpush1.msra.mxu0 %v107
    %224 = vmatprep.subr.mxu0 0.0
    %225 = vmatpush1.msra.mxu0 0.0
    %226 = vmatprep.subr.mxu0 0.0
    %227 = vmatpush1.msra.mxu0 0.0
    %228 = vmatprep.subr.mxu0 0.0
    %229 = vmatpush1.msra.mxu0 0.0
    %230 = vmatprep.subr.mxu0 0.0
    %231 = vmatpush1.msra.mxu0 0.0
    %232 = vmatprep.subr.mxu0 0.0
    %233 = vmatpush1.msra.mxu0 0.0
    %234 = vmatprep.subr.mxu0 0.0
    %235 = vmatpush1.msra.mxu0 0.0
    %236 = vmatprep.subr.mxu0 0.0
    %237 = vmatpush1.msra.mxu0 0.0
    %238 = vmatprep.subr.mxu0 0.0
    %239 = vmatpush1.msra.mxu0 0.0
    %240 = vmatprep.subr.mxu0 0.0
    %241 = vmatpush1.msra.mxu0 0.0
    %242 = vmatprep.subr.mxu0 0.0
    %243 = vmatpush1.msra.mxu0 0.0
    %244 = vmatprep.subr.mxu0 0.0
    %245 = vmatpush1.msra.mxu0 0.0
    %246 = vmatprep.subr.mxu0 0.0
    %247 = vmatpush1.msra.mxu0 0.0
    %248 = vmatprep.subr.mxu0 0.0
    %249 = vmatpush1.msra.mxu0 0.0
    %250 = vmatprep.subr.mxu0 0.0
    %251 = vmatpush1.msra.mxu0 0.0
    %252 = vmatprep.subr.mxu0 0.0
    %253 = vmatpush1.msra.mxu0 0.0
    %254 = vmatprep.subr.mxu0 0.0
    %255 = vmatpush1.msra.mxu0 0.0
    %256 = vmatprep.subr.mxu0 0.0
    %257 = vmatpush1.msra.mxu0 0.0
    %258 = vmatprep.subr.mxu0 0.0
    %259 = vmatpush1.msra.mxu0 0.0
    %260 = vmatprep.subr.mxu0 0.0
    %261 = vmatpush1.msra.mxu0 0.0
    %262 = vmatprep.subr.mxu0 0.0
    %263 = vmatpush1.msra.mxu0 0.0
    %264 = vmatprep.subr.mxu0 0.0
    %265 = vmatpush1.msra.mxu0 0.0
    %266 = vmatprep.subr.mxu0 0.0
    %267 = vmatpush1.msra.mxu0 0.0
    %268 = vmatprep.subr.mxu0 0.0
    %269 = vmatpush1.msra.mxu0 0.0
    %270 = vmatprep.subr.mxu0 0.0
    %271 = vmatpush1.msra.mxu0 0.0
    %272 = vmatprep.subr.mxu0 0.0
    %273 = vmatpush1.msra.mxu0 0.0
    %274 = vmatprep.subr.mxu0 0.0
    %275 = vmatpush1.msra.mxu0 0.0
    %276 = vmatprep.subr.mxu0 0.0
    %277 = vmatpush1.msra.mxu0 0.0
    %278 = vmatprep.subr.mxu0 0.0
    %279 = vmatpush1.msra.mxu0 0.0
    %280 = vmatprep.subr.mxu0 0.0
    %281 = vmatpush1.msra.mxu0 0.0
    %282 = vmatprep.subr.mxu0 0.0
    %283 = vmatpush1.msra.mxu0 0.0
    %284 = vmatprep.subr.mxu0 0.0
    %285 = vmatpush1.msra.mxu0 0.0
    %286 = vmatprep.mubr.f32.mxu0 0.0
    %287 = vmatmul.mubr.f32.gmra.mrb[0].mxu0 %v140
    %v288 = vpop.f32.mrb[0].mxu0
    %v289 = vadd.f32 %v131, %v288
    %v290 = vpop.f32.mrb[0].mxu0
    %v291 = vadd.f32 %v131, %v290
    %292 = vmatprep.mubr.f32.mxu0 0.0
    %293 = vmatmul.mubr.f32.gmra.mrb[0].mxu0 %v143
    %v294 = vpop.f32.mrb[0].mxu0
    %v295 = vadd.f32 %v136, %v294
    %v296 = vpop.f32.mrb[0].mxu0
    %v297 = vadd.f32 %v136, %v296
    %298 = vdwg.mxu0
    %vm299 = vcmp.ge.f32.partialorder %v119, 0.0
    %vm300 = vcmp.ge.f32.partialorder %v120, 0.0
    %vm301 = vcmp.ge.f32.partialorder %v121, 0.0
    %vm302 = vcmp.ge.f32.partialorder %v122, 0.0
    %vm303 = vcmp.ge.f32.partialorder %v123, 0.0
    %v304 = vmul.f32 %v119, 0.1
    %v305 = vmul.f32 %v120, 0.1
    %v306 = vmul.f32 %v121, 0.1
    %v307 = vmul.f32 %v122, 0.1
    %v308 = vmul.f32 %v123, 0.1
    %v309 = vsel %vm299, %v119, %v304
    %v310 = vsel %vm300, %v120, %v305
    %v311 = vsel %vm301, %v121, %v306
    %v312 = vsel %vm302, %v122, %v307
    %v313 = vsel %vm303, %v123, %v308
    %v314 = vld [vmem:[%s5] sm:$0xff]
    %315 = vrot.lane.b32.xlu0 %v309, 2
    %v316 = vpop.permute.xlu0 %315
    %317 = vrot.lane.b32.xlu0 %v310, 2
    %v318 = vpop.permute.xlu0 %317
    %319 = vrot.lane.b32.xlu0 %v311, 2
    %v320 = vpop.permute.xlu0 %319
    %321 = vrot.lane.b32.xlu0 %v312, 2
    %v322 = vpop.permute.xlu0 %321
    %323 = vrot.lane.b32.xlu0 %v313, 2
    %v324 = vpop.permute.xlu0 %323
    %vm325 = vcmp.lt.s32.totalorder %v88, 2
    %v326 = vsel %vm325, %v322, %v324
    %v327 = vsel %vm325, %v320, %v322
    %v328 = vsel %vm325, %v318, %v320
    %v329 = vsel %vm325, %v316, %v318
    %v330 = vsel %vm325, %v324, %v316
    %s331 = scalar_lea.vmem %s5, 8
    %v332 = vld [vmem:[%s331] sm:$0xff]
    %333 = vrot.lane.b32.xlu0 %v309, 1
    %v334 = vpop.permute.xlu0 %333
    %335 = vrot.lane.b32.xlu0 %v310, 1
    %v336 = vpop.permute.xlu0 %335
    %337 = vrot.lane.b32.xlu0 %v311, 1
    %v338 = vpop.permute.xlu0 %337
    %339 = vrot.lane.b32.xlu0 %v312, 1
    %v340 = vpop.permute.xlu0 %339
    %341 = vrot.lane.b32.xlu0 %v313, 1
    %v342 = vpop.permute.xlu0 %341
    %vm343 = vcmp.lt.s32.totalorder %v88, 1
    %v344 = vsel %vm343, %v340, %v342
    %v345 = vsel %vm343, %v338, %v340
    %v346 = vsel %vm343, %v336, %v338
    %v347 = vsel %vm343, %v334, %v336
    %v348 = vsel %vm343, %v342, %v334
    %v350 = vsel %vm138, %v332, 0
    %352 = vmatprep.subr.mxu0 %v347
    %353 = vmatpush1.msra.mxu0 %v348
    %354 = vmatprep.subr.mxu0 0.0
    %355 = vmatpush1.msra.mxu0 0.0
    %356 = vmatprep.subr.mxu0 0.0
    %357 = vmatpush1.msra.mxu0 0.0
    %358 = vmatprep.subr.mxu0 0.0
    %359 = vmatpush1.msra.mxu0 0.0
    %360 = vmatprep.subr.mxu0 0.0
    %361 = vmatpush1.msra.mxu0 0.0
    %362 = vmatprep.subr.mxu0 0.0
    %363 = vmatpush1.msra.mxu0 0.0
    %364 = vmatprep.subr.mxu0 0.0
    %365 = vmatpush1.msra.mxu0 0.0
    %366 = vmatprep.subr.mxu0 0.0
    %367 = vmatpush1.msra.mxu0 0.0
    %368 = vmatprep.subr.mxu0 0.0
    %369 = vmatpush1.msra.mxu0 0.0
    %370 = vmatprep.subr.mxu0 0.0
    %371 = vmatpush1.msra.mxu0 0.0
    %372 = vmatprep.subr.mxu0 0.0
    %373 = vmatpush1.msra.mxu0 0.0
    %374 = vmatprep.subr.mxu0 0.0
    %375 = vmatpush1.msra.mxu0 0.0
    %376 = vmatprep.subr.mxu0 0.0
    %377 = vmatpush1.msra.mxu0 0.0
    %378 = vmatprep.subr.mxu0 0.0
    %379 = vmatpush1.msra.mxu0 0.0
    %380 = vmatprep.subr.mxu0 0.0
    %381 = vmatpush1.msra.mxu0 0.0
    %382 = vmatprep.subr.mxu0 0.0
    %383 = vmatpush1.msra.mxu0 0.0
    %384 = vmatprep.subr.mxu0 0.0
    %385 = vmatpush1.msra.mxu0 0.0
    %386 = vmatprep.subr.mxu0 0.0
    %387 = vmatpush1.msra.mxu0 0.0
    %388 = vmatprep.subr.mxu0 0.0
    %389 = vmatpush1.msra.mxu0 0.0
    %390 = vmatprep.subr.mxu0 0.0
    %391 = vmatpush1.msra.mxu0 0.0
    %392 = vmatprep.subr.mxu0 0.0
    %393 = vmatpush1.msra.mxu0 0.0
    %394 = vmatprep.subr.mxu0 0.0
    %395 = vmatpush1.msra.mxu0 0.0
    %396 = vmatprep.subr.mxu0 0.0
    %397 = vmatpush1.msra.mxu0 0.0
    %398 = vmatprep.subr.mxu0 0.0
    %399 = vmatpush1.msra.mxu0 0.0
    %400 = vmatprep.subr.mxu0 0.0
    %401 = vmatpush1.msra.mxu0 0.0
    %402 = vmatprep.subr.mxu0 0.0
    %403 = vmatpush1.msra.mxu0 0.0
    %404 = vmatprep.subr.mxu0 0.0
    %405 = vmatpush1.msra.mxu0 0.0
    %406 = vmatprep.subr.mxu0 0.0
    %407 = vmatpush1.msra.mxu0 0.0
    %408 = vmatprep.subr.mxu0 0.0
    %409 = vmatpush1.msra.mxu0 0.0
    %410 = vmatprep.subr.mxu0 0.0
    %411 = vmatpush1.msra.mxu0 0.0
    %412 = vmatprep.subr.mxu0 0.0
    %413 = vmatpush1.msra.mxu0 0.0
    %414 = vmatprep.subr.mxu0 0.0
    %415 = vmatpush1.msra.mxu0 0.0
    %416 = vmatprep.mubr.f32.mxu0 0.0
    %417 = vmatmul.mubr.f32.gmra.mrb[0].mxu0 %v350
    %v418 = vpop.f32.mrb[0].mxu0
    %v419 = vadd.f32 0.0, %v418
    %v420 = vpop.f32.mrb[0].mxu0
    %v421 = vadd.f32 0.0, %v420
    %422 = vdwg.mxu0
    %423 = vmatprep.subr.mxu0 %v345
    %424 = vmatpush1.msra.mxu0 %v346
    %425 = vmatprep.subr.mxu0 0.0
    %426 = vmatpush1.msra.mxu0 0.0
    %427 = vmatprep.subr.mxu0 0.0
    %428 = vmatpush1.msra.mxu0 0.0
    %429 = vmatprep.subr.mxu0 0.0
    %430 = vmatpush1.msra.mxu0 0.0
    %431 = vmatprep.subr.mxu0 0.0
    %432 = vmatpush1.msra.mxu0 0.0
    %433 = vmatprep.subr.mxu0 0.0
    %434 = vmatpush1.msra.mxu0 0.0
    %435 = vmatprep.subr.mxu0 0.0
    %436 = vmatpush1.msra.mxu0 0.0
    %437 = vmatprep.subr.mxu0 0.0
    %438 = vmatpush1.msra.mxu0 0.0
    %439 = vmatprep.subr.mxu0 0.0
    %440 = vmatpush1.msra.mxu0 0.0
    %441 = vmatprep.subr.mxu0 0.0
    %442 = vmatpush1.msra.mxu0 0.0
    %443 = vmatprep.subr.mxu0 0.0
    %444 = vmatpush1.msra.mxu0 0.0
    %445 = vmatprep.subr.mxu0 0.0
    %446 = vmatpush1.msra.mxu0 0.0
    %447 = vmatprep.subr.mxu0 0.0
    %448 = vmatpush1.msra.mxu0 0.0
    %449 = vmatprep.subr.mxu0 0.0
    %450 = vmatpush1.msra.mxu0 0.0
    %451 = vmatprep.subr.mxu0 0.0
    %452 = vmatpush1.msra.mxu0 0.0
    %453 = vmatprep.subr.mxu0 0.0
    %454 = vmatpush1.msra.mxu0 0.0
    %455 = vmatprep.subr.mxu0 0.0
    %456 = vmatpush1.msra.mxu0 0.0
    %457 = vmatprep.subr.mxu0 0.0
    %458 = vmatpush1.msra.mxu0 0.0
    %459 = vmatprep.subr.mxu0 0.0
    %460 = vmatpush1.msra.mxu0 0.0
    %461 = vmatprep.subr.mxu0 0.0
    %462 = vmatpush1.msra.mxu0 0.0
    %463 = vmatprep.subr.mxu0 0.0
    %464 = vmatpush1.msra.mxu0 0.0
    %465 = vmatprep.subr.mxu0 0.0
    %466 = vmatpush1.msra.mxu0 0.0
    %467 = vmatprep.subr.mxu0 0.0
    %468 = vmatpush1.msra.mxu0 0.0
    %469 = vmatprep.subr.mxu0 0.0
    %470 = vmatpush1.msra.mxu0 0.0
    %471 = vmatprep.subr.mxu0 0.0
    %472 = vmatpush1.msra.mxu0 0.0
    %473 = vmatprep.subr.mxu0 0.0
    %474 = vmatpush1.msra.mxu0 0.0
    %475 = vmatprep.subr.mxu0 0.0
    %476 = vmatpush1.msra.mxu0 0.0
    %477 = vmatprep.subr.mxu0 0.0
    %478 = vmatpush1.msra.mxu0 0.0
    %479 = vmatprep.subr.mxu0 0.0
    %480 = vmatpush1.msra.mxu0 0.0
    %481 = vmatprep.subr.mxu0 0.0
    %482 = vmatpush1.msra.mxu0 0.0
    %483 = vmatprep.subr.mxu0 0.0
    %484 = vmatpush1.msra.mxu0 0.0
    %485 = vmatprep.subr.mxu0 0.0
    %486 = vmatpush1.msra.mxu0 0.0
    %487 = vmatprep.mubr.f32.mxu0 0.0
    %488 = vmatmul.mubr.f32.gmra.mrb[0].mxu0 %v350
    %v489 = vpop.f32.mrb[0].mxu0
    %v490 = vadd.f32 0.0, %v489
    %v491 = vpop.f32.mrb[0].mxu0
    %v492 = vadd.f32 0.0, %v491
    %493 = vdwg.mxu0
    %494 = vmatprep.subr.mxu0 0.0
    %495 = vmatpush1.msra.mxu0 %v344
    %496 = vmatprep.subr.mxu0 0.0
    %497 = vmatpush1.msra.mxu0 0.0
    %498 = vmatprep.subr.mxu0 0.0
    %499 = vmatpush1.msra.mxu0 0.0
    %500 = vmatprep.subr.mxu0 0.0
    %501 = vmatpush1.msra.mxu0 0.0
    %502 = vmatprep.subr.mxu0 0.0
    %503 = vmatpush1.msra.mxu0 0.0
    %504 = vmatprep.subr.mxu0 0.0
    %505 = vmatpush1.msra.mxu0 0.0
    %506 = vmatprep.subr.mxu0 0.0
    %507 = vmatpush1.msra.mxu0 0.0
    %508 = vmatprep.subr.mxu0 0.0
    %509 = vmatpush1.msra.mxu0 0.0
    %510 = vmatprep.subr.mxu0 0.0
    %511 = vmatpush1.msra.mxu0 0.0
    %512 = vmatprep.subr.mxu0 0.0
    %513 = vmatpush1.msra.mxu0 0.0
    %514 = vmatprep.subr.mxu0 0.0
    %515 = vmatpush1.msra.mxu0 0.0
    %516 = vmatprep.subr.mxu0 0.0
    %517 = vmatpush1.msra.mxu0 0.0
    %518 = vmatprep.subr.mxu0 0.0
    %519 = vmatpush1.msra.mxu0 0.0
    %520 = vmatprep.subr.mxu0 0.0
    %521 = vmatpush1.msra.mxu0 0.0
    %522 = vmatprep.subr.mxu0 0.0
    %523 = vmatpush1.msra.mxu0 0.0
    %524 = vmatprep.subr.mxu0 0.0
    %525 = vmatpush1.msra.mxu0 0.0
    %526 = vmatprep.subr.mxu0 0.0
    %527 = vmatpush1.msra.mxu0 0.0
    %528 = vmatprep.subr.mxu0 0.0
    %529 = vmatpush1.msra.mxu0 0.0
    %530 = vmatprep.subr.mxu0 0.0
    %531 = vmatpush1.msra.mxu0 0.0
    %532 = vmatprep.subr.mxu0 0.0
    %533 = vmatpush1.msra.mxu0 0.0
    %534 = vmatprep.subr.mxu0 0.0
    %535 = vmatpush1.msra.mxu0 0.0
    %536 = vmatprep.subr.mxu0 0.0
    %537 = vmatpush1.msra.mxu0 0.0
    %538 = vmatprep.subr.mxu0 0.0
    %539 = vmatpush1.msra.mxu0 0.0
    %540 = vmatprep.subr.mxu0 0.0
    %541 = vmatpush1.msra.mxu0 0.0
    %542 = vmatprep.subr.mxu0 0.0
    %543 = vmatpush1.msra.mxu0 0.0
    %544 = vmatprep.subr.mxu0 0.0
    %545 = vmatpush1.msra.mxu0 0.0
    %546 = vmatprep.subr.mxu0 0.0
    %547 = vmatpush1.msra.mxu0 0.0
    %548 = vmatprep.subr.mxu0 0.0
    %549 = vmatpush1.msra.mxu0 0.0
    %550 = vmatprep.subr.mxu0 0.0
    %551 = vmatpush1.msra.mxu0 0.0
    %552 = vmatprep.subr.mxu0 0.0
    %553 = vmatpush1.msra.mxu0 0.0
    %554 = vmatprep.subr.mxu0 0.0
    %555 = vmatpush1.msra.mxu0 0.0
    %556 = vmatprep.subr.mxu0 0.0
    %557 = vmatpush1.msra.mxu0 0.0
    %558 = vmatprep.mubr.f32.mxu0 0.0
    %559 = vmatmul.mubr.f32.gmra.mrb[0].mxu0 %v350
    %v560 = vpop.f32.mrb[0].mxu0
    %v561 = vadd.f32 0.0, %v560
    %v562 = vpop.f32.mrb[0].mxu0
    %563 = vdwg.mxu0
    %v565 = vsel %vm138, %v314, 0
    %567 = vmatprep.subr.mxu0 %v329
    %568 = vmatpush1.msra.mxu0 %v330
    %569 = vmatprep.subr.mxu0 0.0
    %570 = vmatpush1.msra.mxu0 0.0
    %571 = vmatprep.subr.mxu0 0.0
    %572 = vmatpush1.msra.mxu0 0.0
    %573 = vmatprep.subr.mxu0 0.0
    %574 = vmatpush1.msra.mxu0 0.0
    %575 = vmatprep.subr.mxu0 0.0
    %576 = vmatpush1.msra.mxu0 0.0
    %577 = vmatprep.subr.mxu0 0.0
    %578 = vmatpush1.msra.mxu0 0.0
    %579 = vmatprep.subr.mxu0 0.0
    %580 = vmatpush1.msra.mxu0 0.0
    %581 = vmatprep.subr.mxu0 0.0
    %582 = vmatpush1.msra.mxu0 0.0
    %583 = vmatprep.subr.mxu0 0.0
    %584 = vmatpush1.msra.mxu0 0.0
    %585 = vmatprep.subr.mxu0 0.0
    %586 = vmatpush1.msra.mxu0 0.0
    %587 = vmatprep.subr.mxu0 0.0
    %588 = vmatpush1.msra.mxu0 0.0
    %589 = vmatprep.subr.mxu0 0.0
    %590 = vmatpush1.msra.mxu0 0.0
    %591 = vmatprep.subr.mxu0 0.0
    %592 = vmatpush1.msra.mxu0 0.0
    %593 = vmatprep.subr.mxu0 0.0
    %594 = vmatpush1.msra.mxu0 0.0
    %595 = vmatprep.subr.mxu0 0.0
    %596 = vmatpush1.msra.mxu0 0.0
    %597 = vmatprep.subr.mxu0 0.0
    %598 = vmatpush1.msra.mxu0 0.0
    %599 = vmatprep.subr.mxu0 0.0
    %600 = vmatpush1.msra.mxu0 0.0
    %601 = vmatprep.subr.mxu0 0.0
    %602 = vmatpush1.msra.mxu0 0.0
    %603 = vmatprep.subr.mxu0 0.0
    %604 = vmatpush1.msra.mxu0 0.0
    %605 = vmatprep.subr.mxu0 0.0
    %606 = vmatpush1.msra.mxu0 0.0
    %607 = vmatprep.subr.mxu0 0.0
    %608 = vmatpush1.msra.mxu0 0.0
    %609 = vmatprep.subr.mxu0 0.0
    %610 = vmatpush1.msra.mxu0 0.0
    %611 = vmatprep.subr.mxu0 0.0
    %612 = vmatpush1.msra.mxu0 0.0
    %613 = vmatprep.subr.mxu0 0.0
    %614 = vmatpush1.msra.mxu0 0.0
    %615 = vmatprep.subr.mxu0 0.0
    %616 = vmatpush1.msra.mxu0 0.0
    %617 = vmatprep.subr.mxu0 0.0
    %618 = vmatpush1.msra.mxu0 0.0
    %619 = vmatprep.subr.mxu0 0.0
    %620 = vmatpush1.msra.mxu0 0.0
    %621 = vmatprep.subr.mxu0 0.0
    %622 = vmatpush1.msra.mxu0 0.0
    %623 = vmatprep.subr.mxu0 0.0
    %624 = vmatpush1.msra.mxu0 0.0
    %625 = vmatprep.subr.mxu0 0.0
    %626 = vmatpush1.msra.mxu0 0.0
    %627 = vmatprep.subr.mxu0 0.0
    %628 = vmatpush1.msra.mxu0 0.0
    %629 = vmatprep.subr.mxu0 0.0
    %630 = vmatpush1.msra.mxu0 0.0
    %631 = vmatprep.mubr.f32.mxu0 0.0
    %632 = vmatmul.mubr.f32.gmra.mrb[0].mxu0 %v565
    %v633 = vpop.f32.mrb[0].mxu0
    %v634 = vadd.f32 %v419, %v633
    %v635 = vpop.f32.mrb[0].mxu0
    %v636 = vadd.f32 %v421, %v635
    %637 = vdwg.mxu0
    %638 = vmatprep.subr.mxu0 %v327
    %639 = vmatpush1.msra.mxu0 %v328
    %640 = vmatprep.subr.mxu0 0.0
    %641 = vmatpush1.msra.mxu0 0.0
    %642 = vmatprep.subr.mxu0 0.0
    %643 = vmatpush1.msra.mxu0 0.0
    %644 = vmatprep.subr.mxu0 0.0
    %645 = vmatpush1.msra.mxu0 0.0
    %646 = vmatprep.subr.mxu0 0.0
    %647 = vmatpush1.msra.mxu0 0.0
    %648 = vmatprep.subr.mxu0 0.0
    %649 = vmatpush1.msra.mxu0 0.0
    %650 = vmatprep.subr.mxu0 0.0
    %651 = vmatpush1.msra.mxu0 0.0
    %652 = vmatprep.subr.mxu0 0.0
    %653 = vmatpush1.msra.mxu0 0.0
    %654 = vmatprep.subr.mxu0 0.0
    %655 = vmatpush1.msra.mxu0 0.0
    %656 = vmatprep.subr.mxu0 0.0
    %657 = vmatpush1.msra.mxu0 0.0
    %658 = vmatprep.subr.mxu0 0.0
    %659 = vmatpush1.msra.mxu0 0.0
    %660 = vmatprep.subr.mxu0 0.0
    %661 = vmatpush1.msra.mxu0 0.0
    %662 = vmatprep.subr.mxu0 0.0
    %663 = vmatpush1.msra.mxu0 0.0
    %664 = vmatprep.subr.mxu0 0.0
    %665 = vmatpush1.msra.mxu0 0.0
    %666 = vmatprep.subr.mxu0 0.0
    %667 = vmatpush1.msra.mxu0 0.0
    %668 = vmatprep.subr.mxu0 0.0
    %669 = vmatpush1.msra.mxu0 0.0
    %670 = vmatprep.subr.mxu0 0.0
    %671 = vmatpush1.msra.mxu0 0.0
    %672 = vmatprep.subr.mxu0 0.0
    %673 = vmatpush1.msra.mxu0 0.0
    %674 = vmatprep.subr.mxu0 0.0
    %675 = vmatpush1.msra.mxu0 0.0
    %676 = vmatprep.subr.mxu0 0.0
    %677 = vmatpush1.msra.mxu0 0.0
    %678 = vmatprep.subr.mxu0 0.0
    %679 = vmatpush1.msra.mxu0 0.0
    %680 = vmatprep.subr.mxu0 0.0
    %681 = vmatpush1.msra.mxu0 0.0
    %682 = vmatprep.subr.mxu0 0.0
    %683 = vmatpush1.msra.mxu0 0.0
    %684 = vmatprep.subr.mxu0 0.0
    %685 = vmatpush1.msra.mxu0 0.0
    %686 = vmatprep.subr.mxu0 0.0
    %687 = vmatpush1.msra.mxu0 0.0
    %688 = vmatprep.subr.mxu0 0.0
    %689 = vmatpush1.msra.mxu0 0.0
    %690 = vmatprep.subr.mxu0 0.0
    %691 = vmatpush1.msra.mxu0 0.0
    %692 = vmatprep.subr.mxu0 0.0
    %693 = vmatpush1.msra.mxu0 0.0
    %694 = vmatprep.subr.mxu0 0.0
    %695 = vmatpush1.msra.mxu0 0.0
    %696 = vmatprep.subr.mxu0 0.0
    %697 = vmatpush1.msra.mxu0 0.0
    %698 = vmatprep.subr.mxu0 0.0
    %699 = vmatpush1.msra.mxu0 0.0
    %700 = vmatprep.subr.mxu0 0.0
    %701 = vmatpush1.msra.mxu0 0.0
    %702 = vmatprep.mubr.f32.mxu0 0.0
    %703 = vmatmul.mubr.f32.gmra.mrb[0].mxu0 %v565
    %v704 = vpop.f32.mrb[0].mxu0
    %v705 = vadd.f32 %v490, %v704
    %v706 = vpop.f32.mrb[0].mxu0
    %v707 = vadd.f32 %v492, %v706
    %708 = vdwg.mxu0
    %709 = vmatprep.subr.mxu0 0.0
    %710 = vmatpush1.msra.mxu0 %v326
    %711 = vmatprep.subr.mxu0 0.0
    %712 = vmatpush1.msra.mxu0 0.0
    %713 = vmatprep.subr.mxu0 0.0
    %714 = vmatpush1.msra.mxu0 0.0
    %715 = vmatprep.subr.mxu0 0.0
    %716 = vmatpush1.msra.mxu0 0.0
    %717 = vmatprep.subr.mxu0 0.0
    %718 = vmatpush1.msra.mxu0 0.0
    %719 = vmatprep.subr.mxu0 0.0
    %720 = vmatpush1.msra.mxu0 0.0
    %721 = vmatprep.subr.mxu0 0.0
    %722 = vmatpush1.msra.mxu0 0.0
    %723 = vmatprep.subr.mxu0 0.0
    %724 = vmatpush1.msra.mxu0 0.0
    %725 = vmatprep.subr.mxu0 0.0
    %726 = vmatpush1.msra.mxu0 0.0
    %727 = vmatprep.subr.mxu0 0.0
    %728 = vmatpush1.msra.mxu0 0.0
    %729 = vmatprep.subr.mxu0 0.0
    %730 = vmatpush1.msra.mxu0 0.0
    %731 = vmatprep.subr.mxu0 0.0
    %732 = vmatpush1.msra.mxu0 0.0
    %733 = vmatprep.subr.mxu0 0.0
    %734 = vmatpush1.msra.mxu0 0.0
    %735 = vmatprep.subr.mxu0 0.0
    %736 = vmatpush1.msra.mxu0 0.0
    %737 = vmatprep.subr.mxu0 0.0
    %738 = vmatpush1.msra.mxu0 0.0
    %739 = vmatprep.subr.mxu0 0.0
    %740 = vmatpush1.msra.mxu0 0.0
    %741 = vmatprep.subr.mxu0 0.0
    %742 = vmatpush1.msra.mxu0 0.0
    %743 = vmatprep.subr.mxu0 0.0
    %744 = vmatpush1.msra.mxu0 0.0
    %745 = vmatprep.subr.mxu0 0.0
    %746 = vmatpush1.msra.mxu0 0.0
    %747 = vmatprep.subr.mxu0 0.0
    %748 = vmatpush1.msra.mxu0 0.0
    %749 = vmatprep.subr.mxu0 0.0
    %750 = vmatpush1.msra.mxu0 0.0
    %751 = vmatprep.subr.mxu0 0.0
    %752 = vmatpush1.msra.mxu0 0.0
    %753 = vmatprep.subr.mxu0 0.0
    %754 = vmatpush1.msra.mxu0 0.0
    %755 = vmatprep.subr.mxu0 0.0
    %756 = vmatpush1.msra.mxu0 0.0
    %757 = vmatprep.subr.mxu0 0.0
    %758 = vmatpush1.msra.mxu0 0.0
    %759 = vmatprep.subr.mxu0 0.0
    %760 = vmatpush1.msra.mxu0 0.0
    %761 = vmatprep.subr.mxu0 0.0
    %762 = vmatpush1.msra.mxu0 0.0
    %763 = vmatprep.subr.mxu0 0.0
    %764 = vmatpush1.msra.mxu0 0.0
    %765 = vmatprep.subr.mxu0 0.0
    %766 = vmatpush1.msra.mxu0 0.0
    %767 = vmatprep.subr.mxu0 0.0
    %768 = vmatpush1.msra.mxu0 0.0
    %769 = vmatprep.subr.mxu0 0.0
    %770 = vmatpush1.msra.mxu0 0.0
    %771 = vmatprep.subr.mxu0 0.0
    %772 = vmatpush1.msra.mxu0 0.0
    %773 = vmatprep.mubr.f32.mxu0 0.0
    %774 = vmatmul.mubr.f32.gmra.mrb[0].mxu0 %v565
    %v775 = vpop.f32.mrb[0].mxu0
    %v776 = vadd.f32 %v561, %v775
    %v777 = vpop.f32.mrb[0].mxu0
    %778 = vdwg.mxu0
    %s779 = scalar_lea.vmem %s5, 16
    %v780 = vld [vmem:[%s779] sm:$0xff]
    %v782 = vsel %vm138, %v780, 0
    %784 = vmatprep.subr.mxu0 %v310
    %785 = vmatpush1.msra.mxu0 %v309
    %786 = vmatprep.subr.mxu0 0.0
    %787 = vmatpush1.msra.mxu0 0.0
    %788 = vmatprep.subr.mxu0 0.0
    %789 = vmatpush1.msra.mxu0 0.0
    %790 = vmatprep.subr.mxu0 0.0
    %791 = vmatpush1.msra.mxu0 0.0
    %792 = vmatprep.subr.mxu0 0.0
    %793 = vmatpush1.msra.mxu0 0.0
    %794 = vmatprep.subr.mxu0 0.0
    %795 = vmatpush1.msra.mxu0 0.0
    %796 = vmatprep.subr.mxu0 0.0
    %797 = vmatpush1.msra.mxu0 0.0
    %798 = vmatprep.subr.mxu0 0.0
    %799 = vmatpush1.msra.mxu0 0.0
    %800 = vmatprep.subr.mxu0 0.0
    %801 = vmatpush1.msra.mxu0 0.0
    %802 = vmatprep.subr.mxu0 0.0
    %803 = vmatpush1.msra.mxu0 0.0
    %804 = vmatprep.subr.mxu0 0.0
    %805 = vmatpush1.msra.mxu0 0.0
    %806 = vmatprep.subr.mxu0 0.0
    %807 = vmatpush1.msra.mxu0 0.0
    %808 = vmatprep.subr.mxu0 0.0
    %809 = vmatpush1.msra.mxu0 0.0
    %810 = vmatprep.subr.mxu0 0.0
    %811 = vmatpush1.msra.mxu0 0.0
    %812 = vmatprep.subr.mxu0 0.0
    %813 = vmatpush1.msra.mxu0 0.0
    %814 = vmatprep.subr.mxu0 0.0
    %815 = vmatpush1.msra.mxu0 0.0
    %816 = vmatprep.subr.mxu0 0.0
    %817 = vmatpush1.msra.mxu0 0.0
    %818 = vmatprep.subr.mxu0 0.0
    %819 = vmatpush1.msra.mxu0 0.0
    %820 = vmatprep.subr.mxu0 0.0
    %821 = vmatpush1.msra.mxu0 0.0
    %822 = vmatprep.subr.mxu0 0.0
    %823 = vmatpush1.msra.mxu0 0.0
    %824 = vmatprep.subr.mxu0 0.0
    %825 = vmatpush1.msra.mxu0 0.0
    %826 = vmatprep.subr.mxu0 0.0
    %827 = vmatpush1.msra.mxu0 0.0
    %828 = vmatprep.subr.mxu0 0.0
    %829 = vmatpush1.msra.mxu0 0.0
    %830 = vmatprep.subr.mxu0 0.0
    %831 = vmatpush1.msra.mxu0 0.0
    %832 = vmatprep.subr.mxu0 0.0
    %833 = vmatpush1.msra.mxu0 0.0
    %834 = vmatprep.subr.mxu0 0.0
    %835 = vmatpush1.msra.mxu0 0.0
    %836 = vmatprep.subr.mxu0 0.0
    %837 = vmatpush1.msra.mxu0 0.0
    %838 = vmatprep.subr.mxu0 0.0
    %839 = vmatpush1.msra.mxu0 0.0
    %840 = vmatprep.subr.mxu0 0.0
    %841 = vmatpush1.msra.mxu0 0.0
    %842 = vmatprep.subr.mxu0 0.0
    %843 = vmatpush1.msra.mxu0 0.0
    %844 = vmatprep.subr.mxu0 0.0
    %845 = vmatpush1.msra.mxu0 0.0
    %846 = vmatprep.subr.mxu0 0.0
    %847 = vmatpush1.msra.mxu0 0.0
    %848 = vmatprep.mubr.f32.mxu0 0.0
    %849 = vmatmul.mubr.f32.gmra.mrb[0].mxu0 %v782
    %v850 = vpop.f32.mrb[0].mxu0
    %v851 = vadd.f32 0.0, %v850
    %v852 = vpop.f32.mrb[0].mxu0
    %v853 = vadd.f32 0.0, %v852
    %854 = vdwg.mxu0
    %855 = vmatprep.subr.mxu0 %v312
    %856 = vmatpush1.msra.mxu0 %v311
    %857 = vmatprep.subr.mxu0 0.0
    %858 = vmatpush1.msra.mxu0 0.0
    %859 = vmatprep.subr.mxu0 0.0
    %860 = vmatpush1.msra.mxu0 0.0
    %861 = vmatprep.subr.mxu0 0.0
    %862 = vmatpush1.msra.mxu0 0.0
    %863 = vmatprep.subr.mxu0 0.0
    %864 = vmatpush1.msra.mxu0 0.0
    %865 = vmatprep.subr.mxu0 0.0
    %866 = vmatpush1.msra.mxu0 0.0
    %867 = vmatprep.subr.mxu0 0.0
    %868 = vmatpush1.msra.mxu0 0.0
    %869 = vmatprep.subr.mxu0 0.0
    %870 = vmatpush1.msra.mxu0 0.0
    %871 = vmatprep.subr.mxu0 0.0
    %872 = vmatpush1.msra.mxu0 0.0
    %873 = vmatprep.subr.mxu0 0.0
    %874 = vmatpush1.msra.mxu0 0.0
    %875 = vmatprep.subr.mxu0 0.0
    %876 = vmatpush1.msra.mxu0 0.0
    %877 = vmatprep.subr.mxu0 0.0
    %878 = vmatpush1.msra.mxu0 0.0
    %879 = vmatprep.subr.mxu0 0.0
    %880 = vmatpush1.msra.mxu0 0.0
    %881 = vmatprep.subr.mxu0 0.0
    %882 = vmatpush1.msra.mxu0 0.0
    %883 = vmatprep.subr.mxu0 0.0
    %884 = vmatpush1.msra.mxu0 0.0
    %885 = vmatprep.subr.mxu0 0.0
    %886 = vmatpush1.msra.mxu0 0.0
    %887 = vmatprep.subr.mxu0 0.0
    %888 = vmatpush1.msra.mxu0 0.0
    %889 = vmatprep.subr.mxu0 0.0
    %890 = vmatpush1.msra.mxu0 0.0
    %891 = vmatprep.subr.mxu0 0.0
    %892 = vmatpush1.msra.mxu0 0.0
    %893 = vmatprep.subr.mxu0 0.0
    %894 = vmatpush1.msra.mxu0 0.0
    %895 = vmatprep.subr.mxu0 0.0
    %896 = vmatpush1.msra.mxu0 0.0
    %897 = vmatprep.subr.mxu0 0.0
    %898 = vmatpush1.msra.mxu0 0.0
    %899 = vmatprep.subr.mxu0 0.0
    %900 = vmatpush1.msra.mxu0 0.0
    %901 = vmatprep.subr.mxu0 0.0
    %902 = vmatpush1.msra.mxu0 0.0
    %903 = vmatprep.subr.mxu0 0.0
    %904 = vmatpush1.msra.mxu0 0.0
    %905 = vmatprep.subr.mxu0 0.0
    %906 = vmatpush1.msra.mxu0 0.0
    %907 = vmatprep.subr.mxu0 0.0
    %908 = vmatpush1.msra.mxu0 0.0
    %909 = vmatprep.subr.mxu0 0.0
    %910 = vmatpush1.msra.mxu0 0.0
    %911 = vmatprep.subr.mxu0 0.0
    %912 = vmatpush1.msra.mxu0 0.0
    %913 = vmatprep.subr.mxu0 0.0
    %914 = vmatpush1.msra.mxu0 0.0
    %915 = vmatprep.subr.mxu0 0.0
    %916 = vmatpush1.msra.mxu0 0.0
    %917 = vmatprep.subr.mxu0 0.0
    %918 = vmatpush1.msra.mxu0 0.0
    %919 = vmatprep.mubr.f32.mxu0 0.0
    %920 = vmatmul.mubr.f32.gmra.mrb[0].mxu0 %v782
    %v921 = vpop.f32.mrb[0].mxu0
    %v922 = vadd.f32 0.0, %v921
    %v923 = vpop.f32.mrb[0].mxu0
    %v924 = vadd.f32 0.0, %v923
    %925 = vdwg.mxu0
    %926 = vmatprep.subr.mxu0 0.0
    %927 = vmatpush1.msra.mxu0 %v313
    %928 = vmatprep.subr.mxu0 0.0
    %929 = vmatpush1.msra.mxu0 0.0
    %930 = vmatprep.subr.mxu0 0.0
    %931 = vmatpush1.msra.mxu0 0.0
    %932 = vmatprep.subr.mxu0 0.0
    %933 = vmatpush1.msra.mxu0 0.0
    %934 = vmatprep.subr.mxu0 0.0
    %935 = vmatpush1.msra.mxu0 0.0
    %936 = vmatprep.subr.mxu0 0.0
    %937 = vmatpush1.msra.mxu0 0.0
    %938 = vmatprep.subr.mxu0 0.0
    %939 = vmatpush1.msra.mxu0 0.0
    %940 = vmatprep.subr.mxu0 0.0
    %941 = vmatpush1.msra.mxu0 0.0
    %942 = vmatprep.subr.mxu0 0.0
    %943 = vmatpush1.msra.mxu0 0.0
    %944 = vmatprep.subr.mxu0 0.0
    %945 = vmatpush1.msra.mxu0 0.0
    %946 = vmatprep.subr.mxu0 0.0
    %947 = vmatpush1.msra.mxu0 0.0
    %948 = vmatprep.subr.mxu0 0.0
    %949 = vmatpush1.msra.mxu0 0.0
    %950 = vmatprep.subr.mxu0 0.0
    %951 = vmatpush1.msra.mxu0 0.0
    %952 = vmatprep.subr.mxu0 0.0
    %953 = vmatpush1.msra.mxu0 0.0
    %954 = vmatprep.subr.mxu0 0.0
    %955 = vmatpush1.msra.mxu0 0.0
    %956 = vmatprep.subr.mxu0 0.0
    %957 = vmatpush1.msra.mxu0 0.0
    %958 = vmatprep.subr.mxu0 0.0
    %959 = vmatpush1.msra.mxu0 0.0
    %960 = vmatprep.subr.mxu0 0.0
    %961 = vmatpush1.msra.mxu0 0.0
    %962 = vmatprep.subr.mxu0 0.0
    %963 = vmatpush1.msra.mxu0 0.0
    %964 = vmatprep.subr.mxu0 0.0
    %965 = vmatpush1.msra.mxu0 0.0
    %966 = vmatprep.subr.mxu0 0.0
    %967 = vmatpush1.msra.mxu0 0.0
    %968 = vmatprep.subr.mxu0 0.0
    %969 = vmatpush1.msra.mxu0 0.0
    %970 = vmatprep.subr.mxu0 0.0
    %971 = vmatpush1.msra.mxu0 0.0
    %972 = vmatprep.subr.mxu0 0.0
    %973 = vmatpush1.msra.mxu0 0.0
    %974 = vmatprep.subr.mxu0 0.0
    %975 = vmatpush1.msra.mxu0 0.0
    %976 = vmatprep.subr.mxu0 0.0
    %977 = vmatpush1.msra.mxu0 0.0
    %978 = vmatprep.subr.mxu0 0.0
    %979 = vmatpush1.msra.mxu0 0.0
    %980 = vmatprep.subr.mxu0 0.0
    %981 = vmatpush1.msra.mxu0 0.0
    %982 = vmatprep.subr.mxu0 0.0
    %983 = vmatpush1.msra.mxu0 0.0
    %984 = vmatprep.subr.mxu0 0.0
    %985 = vmatpush1.msra.mxu0 0.0
    %986 = vmatprep.subr.mxu0 0.0
    %987 = vmatpush1.msra.mxu0 0.0
    %988 = vmatprep.subr.mxu0 0.0
    %989 = vmatpush1.msra.mxu0 0.0
    %990 = vmatprep.mubr.f32.mxu0 0.0
    %991 = vmatmul.mubr.f32.gmra.mrb[0].mxu0 %v782
    %v992 = vpop.f32.mrb[0].mxu0
    %v993 = vadd.f32 0.0, %v992
    %v994 = vpop.f32.mrb[0].mxu0
    %995 = vdwg.mxu0
    %v996 = vadd.f32 %v634, %v851
    %v997 = vadd.f32 %v636, %v853
    %v998 = vadd.f32 %v705, %v922
    %v999 = vadd.f32 %v707, %v924
    %v1000 = vadd.f32 %v776, %v993
    %v1001 = vld [vmem:[%s6] sm:$0xff]
    %1003 = vset.pattern.permute.xlu0 0
    %1004 = vperm.xlu0 %1003, %v1001
    %v1005 = vpop.permute.xlu0 %1004
    %v1007 = vadd.f32 %v996, %v1005
    %v1008 = vadd.f32 %v997, %v1005
    %v1009 = vadd.f32 %v998, %v1005
    %v1010 = vadd.f32 %v999, %v1005
    %v1011 = vadd.f32 %v1000, %v1005
    %v1012 = vsel %vm114, %v1007, 0.0
    %v1013 = vsel %vm115, %v1008, 0.0
    %v1014 = vsel %vm116, %v1009, 0.0
    %v1015 = vsel %vm117, %v1010, 0.0
    %v1016 = vsel %vm118, %v1011, 0.0
    %vm1017 = vcmp.ge.f32.partialorder %v1012, 0.0
    %vm1018 = vcmp.ge.f32.partialorder %v1013, 0.0
    %vm1019 = vcmp.ge.f32.partialorder %v1014, 0.0
    %vm1020 = vcmp.ge.f32.partialorder %v1015, 0.0
    %vm1021 = vcmp.ge.f32.partialorder %v1016, 0.0
    %v1022 = vmul.f32 %v1012, 0.1
    %v1023 = vmul.f32 %v1013, 0.1
    %v1024 = vmul.f32 %v1014, 0.1
    %v1025 = vmul.f32 %v1015, 0.1
    %v1026 = vmul.f32 %v1016, 0.1
    %v1027 = vsel %vm1017, %v1012, %v1022
    %v1028 = vsel %vm1018, %v1013, %v1023
    %v1029 = vsel %vm1019, %v1014, %v1024
    %v1030 = vsel %vm1020, %v1015, %v1025
    %v1031 = vsel %vm1021, %v1016, %v1026
    %v1032 = vld [vmem:[%s7] sm:$0xff]
    %1033 = vrot.lane.b32.xlu0 %v1027, 4
    %v1034 = vpop.permute.xlu0 %1033
    %1035 = vrot.lane.b32.xlu0 %v1028, 4
    %v1036 = vpop.permute.xlu0 %1035
    %1037 = vrot.lane.b32.xlu0 %v1029, 4
    %v1038 = vpop.permute.xlu0 %1037
    %1039 = vrot.lane.b32.xlu0 %v1030, 4
    %v1040 = vpop.permute.xlu0 %1039
    %1041 = vrot.lane.b32.xlu0 %v1031, 4
    %v1042 = vpop.permute.xlu0 %1041
    %vm1043 = vcmp.lt.s32.totalorder %v88, 4
    %v1044 = vsel %vm1043, %v1040, %v1042
    %v1045 = vsel %vm1043, %v1038, %v1040
    %v1046 = vsel %vm1043, %v1036, %v1038
    %v1047 = vsel %vm1043, %v1034, %v1036
    %v1048 = vsel %vm1043, %v1042, %v1034
    %s1049 = scalar_lea.vmem %s7, 8
    %v1050 = vld [vmem:[%s1049] sm:$0xff]
    %1051 = vrot.lane.b32.xlu0 %v1027, 2
    %v1052 = vpop.permute.xlu0 %1051
    %1053 = vrot.lane.b32.xlu0 %v1028, 2
    %v1054 = vpop.permute.xlu0 %1053
    %1055 = vrot.lane.b32.xlu0 %v1029, 2
    %v1056 = vpop.permute.xlu0 %1055
    %1057 = vrot.lane.b32.xlu0 %v1030, 2
    %v1058 = vpop.permute.xlu0 %1057
    %1059 = vrot.lane.b32.xlu0 %v1031, 2
    %v1060 = vpop.permute.xlu0 %1059
    %v1061 = vsel %vm325, %v1058, %v1060
    %v1062 = vsel %vm325, %v1056, %v1058
    %v1063 = vsel %vm325, %v1054, %v1056
    %v1064 = vsel %vm325, %v1052, %v1054
    %v1065 = vsel %vm325, %v1060, %v1052
    %v1067 = vsel %vm138, %v1050, 0
    %1069 = vmatprep.subr.mxu0 %v1064
    %1070 = vmatpush1.msra.mxu0 %v1065
    %1071 = vmatprep.subr.mxu0 0.0
    %1072 = vmatpush1.msra.mxu0 0.0
    %1073 = vmatprep.subr.mxu0 0.0
    %1074 = vmatpush1.msra.mxu0 0.0
    %1075 = vmatprep.subr.mxu0 0.0
    %1076 = vmatpush1.msra.mxu0 0.0
    %1077 = vmatprep.subr.mxu0 0.0
    %1078 = vmatpush1.msra.mxu0 0.0
    %1079 = vmatprep.subr.mxu0 0.0
    %1080 = vmatpush1.msra.mxu0 0.0
    %1081 = vmatprep.subr.mxu0 0.0
    %1082 = vmatpush1.msra.mxu0 0.0
    %1083 = vmatprep.subr.mxu0 0.0
    %1084 = vmatpush1.msra.mxu0 0.0
    %1085 = vmatprep.subr.mxu0 0.0
    %1086 = vmatpush1.msra.mxu0 0.0
    %1087 = vmatprep.subr.mxu0 0.0
    %1088 = vmatpush1.msra.mxu0 0.0
    %1089 = vmatprep.subr.mxu0 0.0
    %1090 = vmatpush1.msra.mxu0 0.0
    %1091 = vmatprep.subr.mxu0 0.0
    %1092 = vmatpush1.msra.mxu0 0.0
    %1093 = vmatprep.subr.mxu0 0.0
    %1094 = vmatpush1.msra.mxu0 0.0
    %1095 = vmatprep.subr.mxu0 0.0
    %1096 = vmatpush1.msra.mxu0 0.0
    %1097 = vmatprep.subr.mxu0 0.0
    %1098 = vmatpush1.msra.mxu0 0.0
    %1099 = vmatprep.subr.mxu0 0.0
    %1100 = vmatpush1.msra.mxu0 0.0
    %1101 = vmatprep.subr.mxu0 0.0
    %1102 = vmatpush1.msra.mxu0 0.0
    %1103 = vmatprep.subr.mxu0 0.0
    %1104 = vmatpush1.msra.mxu0 0.0
    %1105 = vmatprep.subr.mxu0 0.0
    %1106 = vmatpush1.msra.mxu0 0.0
    %1107 = vmatprep.subr.mxu0 0.0
    %1108 = vmatpush1.msra.mxu0 0.0
    %1109 = vmatprep.subr.mxu0 0.0
    %1110 = vmatpush1.msra.mxu0 0.0
    %1111 = vmatprep.subr.mxu0 0.0
    %1112 = vmatpush1.msra.mxu0 0.0
    %1113 = vmatprep.subr.mxu0 0.0
    %1114 = vmatpush1.msra.mxu0 0.0
    %1115 = vmatprep.subr.mxu0 0.0
    %1116 = vmatpush1.msra.mxu0 0.0
    %1117 = vmatprep.subr.mxu0 0.0
    %1118 = vmatpush1.msra.mxu0 0.0
    %1119 = vmatprep.subr.mxu0 0.0
    %1120 = vmatpush1.msra.mxu0 0.0
    %1121 = vmatprep.subr.mxu0 0.0
    %1122 = vmatpush1.msra.mxu0 0.0
    %1123 = vmatprep.subr.mxu0 0.0
    %1124 = vmatpush1.msra.mxu0 0.0
    %1125 = vmatprep.subr.mxu0 0.0
    %1126 = vmatpush1.msra.mxu0 0.0
    %1127 = vmatprep.subr.mxu0 0.0
    %1128 = vmatpush1.msra.mxu0 0.0
    %1129 = vmatprep.subr.mxu0 0.0
    %1130 = vmatpush1.msra.mxu0 0.0
    %1131 = vmatprep.subr.mxu0 0.0
    %1132 = vmatpush1.msra.mxu0 0.0
    %1133 = vmatprep.mubr.f32.mxu0 0.0
    %1134 = vmatmul.mubr.f32.gmra.mrb[0].mxu0 %v1067
    %v1135 = vpop.f32.mrb[0].mxu0
    %v1136 = vadd.f32 0.0, %v1135
    %v1137 = vpop.f32.mrb[0].mxu0
    %v1138 = vadd.f32 0.0, %v1137
    %1139 = vdwg.mxu0
    %1140 = vmatprep.subr.mxu0 %v1062
    %1141 = vmatpush1.msra.mxu0 %v1063
    %1142 = vmatprep.subr.mxu0 0.0
    %1143 = vmatpush1.msra.mxu0 0.0
    %1144 = vmatprep.subr.mxu0 0.0
    %1145 = vmatpush1.msra.mxu0 0.0
    %1146 = vmatprep.subr.mxu0 0.0
    %1147 = vmatpush1.msra.mxu0 0.0
    %1148 = vmatprep.subr.mxu0 0.0
    %1149 = vmatpush1.msra.mxu0 0.0
    %1150 = vmatprep.subr.mxu0 0.0
    %1151 = vmatpush1.msra.mxu0 0.0
    %1152 = vmatprep.subr.mxu0 0.0
    %1153 = vmatpush1.msra.mxu0 0.0
    %1154 = vmatprep.subr.mxu0 0.0
    %1155 = vmatpush1.msra.mxu0 0.0
    %1156 = vmatprep.subr.mxu0 0.0
    %1157 = vmatpush1.msra.mxu0 0.0
    %1158 = vmatprep.subr.mxu0 0.0
    %1159 = vmatpush1.msra.mxu0 0.0
    %1160 = vmatprep.subr.mxu0 0.0
    %1161 = vmatpush1.msra.mxu0 0.0
    %1162 = vmatprep.subr.mxu0 0.0
    %1163 = vmatpush1.msra.mxu0 0.0
    %1164 = vmatprep.subr.mxu0 0.0
    %1165 = vmatpush1.msra.mxu0 0.0
    %1166 = vmatprep.subr.mxu0 0.0
    %1167 = vmatpush1.msra.mxu0 0.0
    %1168 = vmatprep.subr.mxu0 0.0
    %1169 = vmatpush1.msra.mxu0 0.0
    %1170 = vmatprep.subr.mxu0 0.0
    %1171 = vmatpush1.msra.mxu0 0.0
    %1172 = vmatprep.subr.mxu0 0.0
    %1173 = vmatpush1.msra.mxu0 0.0
    %1174 = vmatprep.subr.mxu0 0.0
    %1175 = vmatpush1.msra.mxu0 0.0
    %1176 = vmatprep.subr.mxu0 0.0
    %1177 = vmatpush1.msra.mxu0 0.0
    %1178 = vmatprep.subr.mxu0 0.0
    %1179 = vmatpush1.msra.mxu0 0.0
    %1180 = vmatprep.subr.mxu0 0.0
    %1181 = vmatpush1.msra.mxu0 0.0
    %1182 = vmatprep.subr.mxu0 0.0
    %1183 = vmatpush1.msra.mxu0 0.0
    %1184 = vmatprep.subr.mxu0 0.0
    %1185 = vmatpush1.msra.mxu0 0.0
    %1186 = vmatprep.subr.mxu0 0.0
    %1187 = vmatpush1.msra.mxu0 0.0
    %1188 = vmatprep.subr.mxu0 0.0
    %1189 = vmatpush1.msra.mxu0 0.0
    %1190 = vmatprep.subr.mxu0 0.0
    %1191 = vmatpush1.msra.mxu0 0.0
    %1192 = vmatprep.subr.mxu0 0.0
    %1193 = vmatpush1.msra.mxu0 0.0
    %1194 = vmatprep.subr.mxu0 0.0
    %1195 = vmatpush1.msra.mxu0 0.0
    %1196 = vmatprep.subr.mxu0 0.0
    %1197 = vmatpush1.msra.mxu0 0.0
    %1198 = vmatprep.subr.mxu0 0.0
    %1199 = vmatpush1.msra.mxu0 0.0
    %1200 = vmatprep.subr.mxu0 0.0
    %1201 = vmatpush1.msra.mxu0 0.0
    %1202 = vmatprep.subr.mxu0 0.0
    %1203 = vmatpush1.msra.mxu0 0.0
    %1204 = vmatprep.mubr.f32.mxu0 0.0
    %1205 = vmatmul.mubr.f32.gmra.mrb[0].mxu0 %v1067
    %v1206 = vpop.f32.mrb[0].mxu0
    %v1207 = vadd.f32 0.0, %v1206
    %v1208 = vpop.f32.mrb[0].mxu0
    %v1209 = vadd.f32 0.0, %v1208
    %1210 = vdwg.mxu0
    %1211 = vmatprep.subr.mxu0 0.0
    %1212 = vmatpush1.msra.mxu0 %v1061
    %1213 = vmatprep.subr.mxu0 0.0
    %1214 = vmatpush1.msra.mxu0 0.0
    %1215 = vmatprep.subr.mxu0 0.0
    %1216 = vmatpush1.msra.mxu0 0.0
    %1217 = vmatprep.subr.mxu0 0.0
    %1218 = vmatpush1.msra.mxu0 0.0
    %1219 = vmatprep.subr.mxu0 0.0
    %1220 = vmatpush1.msra.mxu0 0.0
    %1221 = vmatprep.subr.mxu0 0.0
    %1222 = vmatpush1.msra.mxu0 0.0
    %1223 = vmatprep.subr.mxu0 0.0
    %1224 = vmatpush1.msra.mxu0 0.0
    %1225 = vmatprep.subr.mxu0 0.0
    %1226 = vmatpush1.msra.mxu0 0.0
    %1227 = vmatprep.subr.mxu0 0.0
    %1228 = vmatpush1.msra.mxu0 0.0
    %1229 = vmatprep.subr.mxu0 0.0
    %1230 = vmatpush1.msra.mxu0 0.0
    %1231 = vmatprep.subr.mxu0 0.0
    %1232 = vmatpush1.msra.mxu0 0.0
    %1233 = vmatprep.subr.mxu0 0.0
    %1234 = vmatpush1.msra.mxu0 0.0
    %1235 = vmatprep.subr.mxu0 0.0
    %1236 = vmatpush1.msra.mxu0 0.0
    %1237 = vmatprep.subr.mxu0 0.0
    %1238 = vmatpush1.msra.mxu0 0.0
    %1239 = vmatprep.subr.mxu0 0.0
    %1240 = vmatpush1.msra.mxu0 0.0
    %1241 = vmatprep.subr.mxu0 0.0
    %1242 = vmatpush1.msra.mxu0 0.0
    %1243 = vmatprep.subr.mxu0 0.0
    %1244 = vmatpush1.msra.mxu0 0.0
    %1245 = vmatprep.subr.mxu0 0.0
    %1246 = vmatpush1.msra.mxu0 0.0
    %1247 = vmatprep.subr.mxu0 0.0
    %1248 = vmatpush1.msra.mxu0 0.0
    %1249 = vmatprep.subr.mxu0 0.0
    %1250 = vmatpush1.msra.mxu0 0.0
    %1251 = vmatprep.subr.mxu0 0.0
    %1252 = vmatpush1.msra.mxu0 0.0
    %1253 = vmatprep.subr.mxu0 0.0
    %1254 = vmatpush1.msra.mxu0 0.0
    %1255 = vmatprep.subr.mxu0 0.0
    %1256 = vmatpush1.msra.mxu0 0.0
    %1257 = vmatprep.subr.mxu0 0.0
    %1258 = vmatpush1.msra.mxu0 0.0
    %1259 = vmatprep.subr.mxu0 0.0
    %1260 = vmatpush1.msra.mxu0 0.0
    %1261 = vmatprep.subr.mxu0 0.0
    %1262 = vmatpush1.msra.mxu0 0.0
    %1263 = vmatprep.subr.mxu0 0.0
    %1264 = vmatpush1.msra.mxu0 0.0
    %1265 = vmatprep.subr.mxu0 0.0
    %1266 = vmatpush1.msra.mxu0 0.0
    %1267 = vmatprep.subr.mxu0 0.0
    %1268 = vmatpush1.msra.mxu0 0.0
    %1269 = vmatprep.subr.mxu0 0.0
    %1270 = vmatpush1.msra.mxu0 0.0
    %1271 = vmatprep.subr.mxu0 0.0
    %1272 = vmatpush1.msra.mxu0 0.0
    %1273 = vmatprep.subr.mxu0 0.0
    %1274 = vmatpush1.msra.mxu0 0.0
    %1275 = vmatprep.mubr.f32.mxu0 0.0
    %1276 = vmatmul.mubr.f32.gmra.mrb[0].mxu0 %v1067
    %v1277 = vpop.f32.mrb[0].mxu0
    %v1278 = vadd.f32 0.0, %v1277
    %v1279 = vpop.f32.mrb[0].mxu0
    %1280 = vdwg.mxu0
    %v1282 = vsel %vm138, %v1032, 0
    %1284 = vmatprep.subr.mxu0 %v1047
    %1285 = vmatpush1.msra.mxu0 %v1048
    %1286 = vmatprep.subr.mxu0 0.0
    %1287 = vmatpush1.msra.mxu0 0.0
    %1288 = vmatprep.subr.mxu0 0.0
    %1289 = vmatpush1.msra.mxu0 0.0
    %1290 = vmatprep.subr.mxu0 0.0
    %1291 = vmatpush1.msra.mxu0 0.0
    %1292 = vmatprep.subr.mxu0 0.0
    %1293 = vmatpush1.msra.mxu0 0.0
    %1294 = vmatprep.subr.mxu0 0.0
    %1295 = vmatpush1.msra.mxu0 0.0
    %1296 = vmatprep.subr.mxu0 0.0
    %1297 = vmatpush1.msra.mxu0 0.0
    %1298 = vmatprep.subr.mxu0 0.0
    %1299 = vmatpush1.msra.mxu0 0.0
    %1300 = vmatprep.subr.mxu0 0.0
    %1301 = vmatpush1.msra.mxu0 0.0
    %1302 = vmatprep.subr.mxu0 0.0
    %1303 = vmatpush1.msra.mxu0 0.0
    %1304 = vmatprep.subr.mxu0 0.0
    %1305 = vmatpush1.msra.mxu0 0.0
    %1306 = vmatprep.subr.mxu0 0.0
    %1307 = vmatpush1.msra.mxu0 0.0
    %1308 = vmatprep.subr.mxu0 0.0
    %1309 = vmatpush1.msra.mxu0 0.0
    %1310 = vmatprep.subr.mxu0 0.0
    %1311 = vmatpush1.msra.mxu0 0.0
    %1312 = vmatprep.subr.mxu0 0.0
    %1313 = vmatpush1.msra.mxu0 0.0
    %1314 = vmatprep.subr.mxu0 0.0
    %1315 = vmatpush1.msra.mxu0 0.0
    %1316 = vmatprep.subr.mxu0 0.0
    %1317 = vmatpush1.msra.mxu0 0.0
    %1318 = vmatprep.subr.mxu0 0.0
    %1319 = vmatpush1.msra.mxu0 0.0
    %1320 = vmatprep.subr.mxu0 0.0
    %1321 = vmatpush1.msra.mxu0 0.0
    %1322 = vmatprep.subr.mxu0 0.0
    %1323 = vmatpush1.msra.mxu0 0.0
    %1324 = vmatprep.subr.mxu0 0.0
    %1325 = vmatpush1.msra.mxu0 0.0
    %1326 = vmatprep.subr.mxu0 0.0
    %1327 = vmatpush1.msra.mxu0 0.0
    %1328 = vmatprep.subr.mxu0 0.0
    %1329 = vmatpush1.msra.mxu0 0.0
    %1330 = vmatprep.subr.mxu0 0.0
    %1331 = vmatpush1.msra.mxu0 0.0
    %1332 = vmatprep.subr.mxu0 0.0
    %1333 = vmatpush1.msra.mxu0 0.0
    %1334 = vmatprep.subr.mxu0 0.0
    %1335 = vmatpush1.msra.mxu0 0.0
    %1336 = vmatprep.subr.mxu0 0.0
    %1337 = vmatpush1.msra.mxu0 0.0
    %1338 = vmatprep.subr.mxu0 0.0
    %1339 = vmatpush1.msra.mxu0 0.0
    %1340 = vmatprep.subr.mxu0 0.0
    %1341 = vmatpush1.msra.mxu0 0.0
    %1342 = vmatprep.subr.mxu0 0.0
    %1343 = vmatpush1.msra.mxu0 0.0
    %1344 = vmatprep.subr.mxu0 0.0
    %1345 = vmatpush1.msra.mxu0 0.0
    %1346 = vmatprep.subr.mxu0 0.0
    %1347 = vmatpush1.msra.mxu0 0.0
    %1348 = vmatprep.mubr.f32.mxu0 0.0
    %1349 = vmatmul.mubr.f32.gmra.mrb[0].mxu0 %v1282
    %v1350 = vpop.f32.mrb[0].mxu0
    %v1351 = vadd.f32 %v1136, %v1350
    %v1352 = vpop.f32.mrb[0].mxu0
    %v1353 = vadd.f32 %v1138, %v1352
    %1354 = vdwg.mxu0
    %1355 = vmatprep.subr.mxu0 %v1045
    %1356 = vmatpush1.msra.mxu0 %v1046
    %1357 = vmatprep.subr.mxu0 0.0
    %1358 = vmatpush1.msra.mxu0 0.0
    %1359 = vmatprep.subr.mxu0 0.0
    %1360 = vmatpush1.msra.mxu0 0.0
    %1361 = vmatprep.subr.mxu0 0.0
    %1362 = vmatpush1.msra.mxu0 0.0
    %1363 = vmatprep.subr.mxu0 0.0
    %1364 = vmatpush1.msra.mxu0 0.0
    %1365 = vmatprep.subr.mxu0 0.0
    %1366 = vmatpush1.msra.mxu0 0.0
    %1367 = vmatprep.subr.mxu0 0.0
    %1368 = vmatpush1.msra.mxu0 0.0
    %1369 = vmatprep.subr.mxu0 0.0
    %1370 = vmatpush1.msra.mxu0 0.0
    %1371 = vmatprep.subr.mxu0 0.0
    %1372 = vmatpush1.msra.mxu0 0.0
    %1373 = vmatprep.subr.mxu0 0.0
    %1374 = vmatpush1.msra.mxu0 0.0
    %1375 = vmatprep.subr.mxu0 0.0
    %1376 = vmatpush1.msra.mxu0 0.0
    %1377 = vmatprep.subr.mxu0 0.0
    %1378 = vmatpush1.msra.mxu0 0.0
    %1379 = vmatprep.subr.mxu0 0.0
    %1380 = vmatpush1.msra.mxu0 0.0
    %1381 = vmatprep.subr.mxu0 0.0
    %1382 = vmatpush1.msra.mxu0 0.0
    %1383 = vmatprep.subr.mxu0 0.0
    %1384 = vmatpush1.msra.mxu0 0.0
    %1385 = vmatprep.subr.mxu0 0.0
    %1386 = vmatpush1.msra.mxu0 0.0
    %1387 = vmatprep.subr.mxu0 0.0
    %1388 = vmatpush1.msra.mxu0 0.0
    %1389 = vmatprep.subr.mxu0 0.0
    %1390 = vmatpush1.msra.mxu0 0.0
    %1391 = vmatprep.subr.mxu0 0.0
    %1392 = vmatpush1.msra.mxu0 0.0
    %1393 = vmatprep.subr.mxu0 0.0
    %1394 = vmatpush1.msra.mxu0 0.0
    %1395 = vmatprep.subr.mxu0 0.0
    %1396 = vmatpush1.msra.mxu0 0.0
    %1397 = vmatprep.subr.mxu0 0.0
    %1398 = vmatpush1.msra.mxu0 0.0
    %1399 = vmatprep.subr.mxu0 0.0
    %1400 = vmatpush1.msra.mxu0 0.0
    %1401 = vmatprep.subr.mxu0 0.0
    %1402 = vmatpush1.msra.mxu0 0.0
    %1403 = vmatprep.subr.mxu0 0.0
    %1404 = vmatpush1.msra.mxu0 0.0
    %1405 = vmatprep.subr.mxu0 0.0
    %1406 = vmatpush1.msra.mxu0 0.0
    %1407 = vmatprep.subr.mxu0 0.0
    %1408 = vmatpush1.msra.mxu0 0.0
    %1409 = vmatprep.subr.mxu0 0.0
    %1410 = vmatpush1.msra.mxu0 0.0
    %1411 = vmatprep.subr.mxu0 0.0
    %1412 = vmatpush1.msra.mxu0 0.0
    %1413 = vmatprep.subr.mxu0 0.0
    %1414 = vmatpush1.msra.mxu0 0.0
    %1415 = vmatprep.subr.mxu0 0.0
    %1416 = vmatpush1.msra.mxu0 0.0
    %1417 = vmatprep.subr.mxu0 0.0
    %1418 = vmatpush1.msra.mxu0 0.0
    %1419 = vmatprep.mubr.f32.mxu0 0.0
    %1420 = vmatmul.mubr.f32.gmra.mrb[0].mxu0 %v1282
    %v1421 = vpop.f32.mrb[0].mxu0
    %v1422 = vadd.f32 %v1207, %v1421
    %v1423 = vpop.f32.mrb[0].mxu0
    %v1424 = vadd.f32 %v1209, %v1423
    %1425 = vdwg.mxu0
    %1426 = vmatprep.subr.mxu0 0.0
    %1427 = vmatpush1.msra.mxu0 %v1044
    %1428 = vmatprep.subr.mxu0 0.0
    %1429 = vmatpush1.msra.mxu0 0.0
    %1430 = vmatprep.subr.mxu0 0.0
    %1431 = vmatpush1.msra.mxu0 0.0
    %1432 = vmatprep.subr.mxu0 0.0
    %1433 = vmatpush1.msra.mxu0 0.0
    %1434 = vmatprep.subr.mxu0 0.0
    %1435 = vmatpush1.msra.mxu0 0.0
    %1436 = vmatprep.subr.mxu0 0.0
    %1437 = vmatpush1.msra.mxu0 0.0
    %1438 = vmatprep.subr.mxu0 0.0
    %1439 = vmatpush1.msra.mxu0 0.0
    %1440 = vmatprep.subr.mxu0 0.0
    %1441 = vmatpush1.msra.mxu0 0.0
    %1442 = vmatprep.subr.mxu0 0.0
    %1443 = vmatpush1.msra.mxu0 0.0
    %1444 = vmatprep.subr.mxu0 0.0
    %1445 = vmatpush1.msra.mxu0 0.0
    %1446 = vmatprep.subr.mxu0 0.0
    %1447 = vmatpush1.msra.mxu0 0.0
    %1448 = vmatprep.subr.mxu0 0.0
    %1449 = vmatpush1.msra.mxu0 0.0
    %1450 = vmatprep.subr.mxu0 0.0
    %1451 = vmatpush1.msra.mxu0 0.0
    %1452 = vmatprep.subr.mxu0 0.0
    %1453 = vmatpush1.msra.mxu0 0.0
    %1454 = vmatprep.subr.mxu0 0.0
    %1455 = vmatpush1.msra.mxu0 0.0
    %1456 = vmatprep.subr.mxu0 0.0
    %1457 = vmatpush1.msra.mxu0 0.0
    %1458 = vmatprep.subr.mxu0 0.0
    %1459 = vmatpush1.msra.mxu0 0.0
    %1460 = vmatprep.subr.mxu0 0.0
    %1461 = vmatpush1.msra.mxu0 0.0
    %1462 = vmatprep.subr.mxu0 0.0
    %1463 = vmatpush1.msra.mxu0 0.0
    %1464 = vmatprep.subr.mxu0 0.0
    %1465 = vmatpush1.msra.mxu0 0.0
    %1466 = vmatprep.subr.mxu0 0.0
    %1467 = vmatpush1.msra.mxu0 0.0
    %1468 = vmatprep.subr.mxu0 0.0
    %1469 = vmatpush1.msra.mxu0 0.0
    %1470 = vmatprep.subr.mxu0 0.0
    %1471 = vmatpush1.msra.mxu0 0.0
    %1472 = vmatprep.subr.mxu0 0.0
    %1473 = vmatpush1.msra.mxu0 0.0
    %1474 = vmatprep.subr.mxu0 0.0
    %1475 = vmatpush1.msra.mxu0 0.0
    %1476 = vmatprep.subr.mxu0 0.0
    %1477 = vmatpush1.msra.mxu0 0.0
    %1478 = vmatprep.subr.mxu0 0.0
    %1479 = vmatpush1.msra.mxu0 0.0
    %1480 = vmatprep.subr.mxu0 0.0
    %1481 = vmatpush1.msra.mxu0 0.0
    %1482 = vmatprep.subr.mxu0 0.0
    %1483 = vmatpush1.msra.mxu0 0.0
    %1484 = vmatprep.subr.mxu0 0.0
    %1485 = vmatpush1.msra.mxu0 0.0
    %1486 = vmatprep.subr.mxu0 0.0
    %1487 = vmatpush1.msra.mxu0 0.0
    %1488 = vmatprep.subr.mxu0 0.0
    %1489 = vmatpush1.msra.mxu0 0.0
    %1490 = vmatprep.mubr.f32.mxu0 0.0
    %1491 = vmatmul.mubr.f32.gmra.mrb[0].mxu0 %v1282
    %v1492 = vpop.f32.mrb[0].mxu0
    %v1493 = vadd.f32 %v1278, %v1492
    %v1494 = vpop.f32.mrb[0].mxu0
    %1495 = vdwg.mxu0
    %s1496 = scalar_lea.vmem %s7, 16
    %v1497 = vld [vmem:[%s1496] sm:$0xff]
    %v1499 = vsel %vm138, %v1497, 0
    %1501 = vmatprep.subr.mxu0 %v1028
    %1502 = vmatpush1.msra.mxu0 %v1027
    %1503 = vmatprep.subr.mxu0 0.0
    %1504 = vmatpush1.msra.mxu0 0.0
    %1505 = vmatprep.subr.mxu0 0.0
    %1506 = vmatpush1.msra.mxu0 0.0
    %1507 = vmatprep.subr.mxu0 0.0
    %1508 = vmatpush1.msra.mxu0 0.0
    %1509 = vmatprep.subr.mxu0 0.0
    %1510 = vmatpush1.msra.mxu0 0.0
    %1511 = vmatprep.subr.mxu0 0.0
    %1512 = vmatpush1.msra.mxu0 0.0
    %1513 = vmatprep.subr.mxu0 0.0
    %1514 = vmatpush1.msra.mxu0 0.0
    %1515 = vmatprep.subr.mxu0 0.0
    %1516 = vmatpush1.msra.mxu0 0.0
    %1517 = vmatprep.subr.mxu0 0.0
    %1518 = vmatpush1.msra.mxu0 0.0
    %1519 = vmatprep.subr.mxu0 0.0
    %1520 = vmatpush1.msra.mxu0 0.0
    %1521 = vmatprep.subr.mxu0 0.0
    %1522 = vmatpush1.msra.mxu0 0.0
    %1523 = vmatprep.subr.mxu0 0.0
    %1524 = vmatpush1.msra.mxu0 0.0
    %1525 = vmatprep.subr.mxu0 0.0
    %1526 = vmatpush1.msra.mxu0 0.0
    %1527 = vmatprep.subr.mxu0 0.0
    %1528 = vmatpush1.msra.mxu0 0.0
    %1529 = vmatprep.subr.mxu0 0.0
    %1530 = vmatpush1.msra.mxu0 0.0
    %1531 = vmatprep.subr.mxu0 0.0
    %1532 = vmatpush1.msra.mxu0 0.0
    %1533 = vmatprep.subr.mxu0 0.0
    %1534 = vmatpush1.msra.mxu0 0.0
    %1535 = vmatprep.subr.mxu0 0.0
    %1536 = vmatpush1.msra.mxu0 0.0
    %1537 = vmatprep.subr.mxu0 0.0
    %1538 = vmatpush1.msra.mxu0 0.0
    %1539 = vmatprep.subr.mxu0 0.0
    %1540 = vmatpush1.msra.mxu0 0.0
    %1541 = vmatprep.subr.mxu0 0.0
    %1542 = vmatpush1.msra.mxu0 0.0
    %1543 = vmatprep.subr.mxu0 0.0
    %1544 = vmatpush1.msra.mxu0 0.0
    %1545 = vmatprep.subr.mxu0 0.0
    %1546 = vmatpush1.msra.mxu0 0.0
    %1547 = vmatprep.subr.mxu0 0.0
    %1548 = vmatpush1.msra.mxu0 0.0
    %1549 = vmatprep.subr.mxu0 0.0
    %1550 = vmatpush1.msra.mxu0 0.0
    %1551 = vmatprep.subr.mxu0 0.0
    %1552 = vmatpush1.msra.mxu0 0.0
    %1553 = vmatprep.subr.mxu0 0.0
    %1554 = vmatpush1.msra.mxu0 0.0
    %1555 = vmatprep.subr.mxu0 0.0
    %1556 = vmatpush1.msra.mxu0 0.0
    %1557 = vmatprep.subr.mxu0 0.0
    %1558 = vmatpush1.msra.mxu0 0.0
    %1559 = vmatprep.subr.mxu0 0.0
    %1560 = vmatpush1.msra.mxu0 0.0
    %1561 = vmatprep.subr.mxu0 0.0
    %1562 = vmatpush1.msra.mxu0 0.0
    %1563 = vmatprep.subr.mxu0 0.0
    %1564 = vmatpush1.msra.mxu0 0.0
    %1565 = vmatprep.mubr.f32.mxu0 0.0
    %1566 = vmatmul.mubr.f32.gmra.mrb[0].mxu0 %v1499
    %v1567 = vpop.f32.mrb[0].mxu0
    %v1568 = vadd.f32 0.0, %v1567
    %v1569 = vpop.f32.mrb[0].mxu0
    %v1570 = vadd.f32 0.0, %v1569
    %1571 = vdwg.mxu0
    %1572 = vmatprep.subr.mxu0 %v1030
    %1573 = vmatpush1.msra.mxu0 %v1029
    %1574 = vmatprep.subr.mxu0 0.0
    %1575 = vmatpush1.msra.mxu0 0.0
    %1576 = vmatprep.subr.mxu0 0.0
    %1577 = vmatpush1.msra.mxu0 0.0
    %1578 = vmatprep.subr.mxu0 0.0
    %1579 = vmatpush1.msra.mxu0 0.0
    %1580 = vmatprep.subr.mxu0 0.0
    %1581 = vmatpush1.msra.mxu0 0.0
    %1582 = vmatprep.subr.mxu0 0.0
    %1583 = vmatpush1.msra.mxu0 0.0
    %1584 = vmatprep.subr.mxu0 0.0
    %1585 = vmatpush1.msra.mxu0 0.0
    %1586 = vmatprep.subr.mxu0 0.0
    %1587 = vmatpush1.msra.mxu0 0.0
    %1588 = vmatprep.subr.mxu0 0.0
    %1589 = vmatpush1.msra.mxu0 0.0
    %1590 = vmatprep.subr.mxu0 0.0
    %1591 = vmatpush1.msra.mxu0 0.0
    %1592 = vmatprep.subr.mxu0 0.0
    %1593 = vmatpush1.msra.mxu0 0.0
    %1594 = vmatprep.subr.mxu0 0.0
    %1595 = vmatpush1.msra.mxu0 0.0
    %1596 = vmatprep.subr.mxu0 0.0
    %1597 = vmatpush1.msra.mxu0 0.0
    %1598 = vmatprep.subr.mxu0 0.0
    %1599 = vmatpush1.msra.mxu0 0.0
    %1600 = vmatprep.subr.mxu0 0.0
    %1601 = vmatpush1.msra.mxu0 0.0
    %1602 = vmatprep.subr.mxu0 0.0
    %1603 = vmatpush1.msra.mxu0 0.0
    %1604 = vmatprep.subr.mxu0 0.0
    %1605 = vmatpush1.msra.mxu0 0.0
    %1606 = vmatprep.subr.mxu0 0.0
    %1607 = vmatpush1.msra.mxu0 0.0
    %1608 = vmatprep.subr.mxu0 0.0
    %1609 = vmatpush1.msra.mxu0 0.0
    %1610 = vmatprep.subr.mxu0 0.0
    %1611 = vmatpush1.msra.mxu0 0.0
    %1612 = vmatprep.subr.mxu0 0.0
    %1613 = vmatpush1.msra.mxu0 0.0
    %1614 = vmatprep.subr.mxu0 0.0
    %1615 = vmatpush1.msra.mxu0 0.0
    %1616 = vmatprep.subr.mxu0 0.0
    %1617 = vmatpush1.msra.mxu0 0.0
    %1618 = vmatprep.subr.mxu0 0.0
    %1619 = vmatpush1.msra.mxu0 0.0
    %1620 = vmatprep.subr.mxu0 0.0
    %1621 = vmatpush1.msra.mxu0 0.0
    %1622 = vmatprep.subr.mxu0 0.0
    %1623 = vmatpush1.msra.mxu0 0.0
    %1624 = vmatprep.subr.mxu0 0.0
    %1625 = vmatpush1.msra.mxu0 0.0
    %1626 = vmatprep.subr.mxu0 0.0
    %1627 = vmatpush1.msra.mxu0 0.0
    %1628 = vmatprep.subr.mxu0 0.0
    %1629 = vmatpush1.msra.mxu0 0.0
    %1630 = vmatprep.subr.mxu0 0.0
    %1631 = vmatpush1.msra.mxu0 0.0
    %1632 = vmatprep.subr.mxu0 0.0
    %1633 = vmatpush1.msra.mxu0 0.0
    %1634 = vmatprep.subr.mxu0 0.0
    %1635 = vmatpush1.msra.mxu0 0.0
    %1636 = vmatprep.mubr.f32.mxu0 0.0
    %1637 = vmatmul.mubr.f32.gmra.mrb[0].mxu0 %v1499
    %v1638 = vpop.f32.mrb[0].mxu0
    %v1639 = vadd.f32 0.0, %v1638
    %v1640 = vpop.f32.mrb[0].mxu0
    %v1641 = vadd.f32 0.0, %v1640
    %1642 = vdwg.mxu0
    %1643 = vmatprep.subr.mxu0 0.0
    %1644 = vmatpush1.msra.mxu0 %v1031
    %1645 = vmatprep.subr.mxu0 0.0
    %1646 = vmatpush1.msra.mxu0 0.0
    %1647 = vmatprep.subr.mxu0 0.0
    %1648 = vmatpush1.msra.mxu0 0.0
    %1649 = vmatprep.subr.mxu0 0.0
    %1650 = vmatpush1.msra.mxu0 0.0
    %1651 = vmatprep.subr.mxu0 0.0
    %1652 = vmatpush1.msra.mxu0 0.0
    %1653 = vmatprep.subr.mxu0 0.0
    %1654 = vmatpush1.msra.mxu0 0.0
    %1655 = vmatprep.subr.mxu0 0.0
    %1656 = vmatpush1.msra.mxu0 0.0
    %1657 = vmatprep.subr.mxu0 0.0
    %1658 = vmatpush1.msra.mxu0 0.0
    %1659 = vmatprep.subr.mxu0 0.0
    %1660 = vmatpush1.msra.mxu0 0.0
    %1661 = vmatprep.subr.mxu0 0.0
    %1662 = vmatpush1.msra.mxu0 0.0
    %1663 = vmatprep.subr.mxu0 0.0
    %1664 = vmatpush1.msra.mxu0 0.0
    %1665 = vmatprep.subr.mxu0 0.0
    %1666 = vmatpush1.msra.mxu0 0.0
    %1667 = vmatprep.subr.mxu0 0.0
    %1668 = vmatpush1.msra.mxu0 0.0
    %1669 = vmatprep.subr.mxu0 0.0
    %1670 = vmatpush1.msra.mxu0 0.0
    %1671 = vmatprep.subr.mxu0 0.0
    %1672 = vmatpush1.msra.mxu0 0.0
    %1673 = vmatprep.subr.mxu0 0.0
    %1674 = vmatpush1.msra.mxu0 0.0
    %1675 = vmatprep.subr.mxu0 0.0
    %1676 = vmatpush1.msra.mxu0 0.0
    %1677 = vmatprep.subr.mxu0 0.0
    %1678 = vmatpush1.msra.mxu0 0.0
    %1679 = vmatprep.subr.mxu0 0.0
    %1680 = vmatpush1.msra.mxu0 0.0
    %1681 = vmatprep.subr.mxu0 0.0
    %1682 = vmatpush1.msra.mxu0 0.0
    %1683 = vmatprep.subr.mxu0 0.0
    %1684 = vmatpush1.msra.mxu0 0.0
    %1685 = vmatprep.subr.mxu0 0.0
    %1686 = vmatpush1.msra.mxu0 0.0
    %1687 = vmatprep.subr.mxu0 0.0
    %1688 = vmatpush1.msra.mxu0 0.0
    %1689 = vmatprep.subr.mxu0 0.0
    %1690 = vmatpush1.msra.mxu0 0.0
    %1691 = vmatprep.subr.mxu0 0.0
    %1692 = vmatpush1.msra.mxu0 0.0
    %1693 = vmatprep.subr.mxu0 0.0
    %1694 = vmatpush1.msra.mxu0 0.0
    %1695 = vmatprep.subr.mxu0 0.0
    %1696 = vmatpush1.msra.mxu0 0.0
    %1697 = vmatprep.subr.mxu0 0.0
    %1698 = vmatpush1.msra.mxu0 0.0
    %1699 = vmatprep.subr.mxu0 0.0
    %1700 = vmatpush1.msra.mxu0 0.0
    %1701 = vmatprep.subr.mxu0 0.0
    %1702 = vmatpush1.msra.mxu0 0.0
    %1703 = vmatprep.subr.mxu0 0.0
    %1704 = vmatpush1.msra.mxu0 0.0
    %1705 = vmatprep.subr.mxu0 0.0
    %1706 = vmatpush1.msra.mxu0 0.0
    %1707 = vmatprep.mubr.f32.mxu0 0.0
    %1708 = vmatmul.mubr.f32.gmra.mrb[0].mxu0 %v1499
    %v1709 = vpop.f32.mrb[0].mxu0
    %v1710 = vadd.f32 0.0, %v1709
    %v1711 = vpop.f32.mrb[0].mxu0
    %1712 = vdwg.mxu0
    %v1713 = vadd.f32 %v1351, %v1568
    %v1714 = vadd.f32 %v1353, %v1570
    %v1715 = vadd.f32 %v1422, %v1639
    %v1716 = vadd.f32 %v1424, %v1641
    %v1717 = vadd.f32 %v1493, %v1710
    %v1718 = vld [vmem:[%s8] sm:$0xff]
    %1720 = vset.pattern.permute.xlu0 0
    %1721 = vperm.xlu0 %1720, %v1718
    %v1722 = vpop.permute.xlu0 %1721
    %v1724 = vadd.f32 %v1713, %v1722
    %v1725 = vadd.f32 %v1714, %v1722
    %v1726 = vadd.f32 %v1715, %v1722
    %v1727 = vadd.f32 %v1716, %v1722
    %v1728 = vadd.f32 %v1717, %v1722
    %v1729 = vsel %vm114, %v1724, 0.0
    %v1730 = vsel %vm115, %v1725, 0.0
    %v1731 = vsel %vm116, %v1726, 0.0
    %v1732 = vsel %vm117, %v1727, 0.0
    %v1733 = vsel %vm118, %v1728, 0.0
    %vm1734 = vcmp.ge.f32.partialorder %v1729, 0.0
    %vm1735 = vcmp.ge.f32.partialorder %v1730, 0.0
    %vm1736 = vcmp.ge.f32.partialorder %v1731, 0.0
    %vm1737 = vcmp.ge.f32.partialorder %v1732, 0.0
    %vm1738 = vcmp.ge.f32.partialorder %v1733, 0.0
    %v1739 = vmul.f32 %v1729, 0.1
    %v1740 = vmul.f32 %v1730, 0.1
    %v1741 = vmul.f32 %v1731, 0.1
    %v1742 = vmul.f32 %v1732, 0.1
    %v1743 = vmul.f32 %v1733, 0.1
    %v1744 = vsel %vm1734, %v1729, %v1739
    %v1745 = vsel %vm1735, %v1730, %v1740
    %v1746 = vsel %vm1736, %v1731, %v1741
    %v1747 = vsel %vm1737, %v1732, %v1742
    %v1748 = vsel %vm1738, %v1733, %v1743
    %v1749 = vld [vmem:[%s9] sm:$0xff]
    %v1750 = vld [vmem:[%s9 + $0x8] sm:$0xff]
    %1751 = vrot.lane.b32.xlu0 %v1744, 8
    %v1752 = vpop.permute.xlu0 %1751
    %1753 = vrot.lane.b32.xlu0 %v1745, 8
    %v1754 = vpop.permute.xlu0 %1753
    %1755 = vrot.lane.b32.xlu0 %v1746, 8
    %v1756 = vpop.permute.xlu0 %1755
    %1757 = vrot.lane.b32.xlu0 %v1747, 8
    %v1758 = vpop.permute.xlu0 %1757
    %1759 = vrot.lane.b32.xlu0 %v1748, 8
    %v1760 = vpop.permute.xlu0 %1759
    %vm1761 = vcmp.lt.s32.totalorder %v88, 8
    %v1762 = vsel %vm1761, %v1758, %v1760
    %v1763 = vsel %vm1761, %v1756, %v1758
    %v1764 = vsel %vm1761, %v1754, %v1756
    %v1765 = vsel %vm1761, %v1752, %v1754
    %v1766 = vsel %vm1761, %v1760, %v1752
    %s1767 = scalar_lea.vmem %s9, 16
    %v1768 = vld [vmem:[%s1767] sm:$0xff]
    %v1769 = vld [vmem:[%s1767 + $0x8] sm:$0xff]
    %1770 = vrot.lane.b32.xlu0 %v1744, 4
    %v1771 = vpop.permute.xlu0 %1770
    %1772 = vrot.lane.b32.xlu0 %v1745, 4
    %v1773 = vpop.permute.xlu0 %1772
    %1774 = vrot.lane.b32.xlu0 %v1746, 4
    %v1775 = vpop.permute.xlu0 %1774
    %1776 = vrot.lane.b32.xlu0 %v1747, 4
    %v1777 = vpop.permute.xlu0 %1776
    %1778 = vrot.lane.b32.xlu0 %v1748, 4
    %v1779 = vpop.permute.xlu0 %1778
    %v1780 = vsel %vm1043, %v1777, %v1779
    %v1781 = vsel %vm1043, %v1775, %v1777
    %v1782 = vsel %vm1043, %v1773, %v1775
    %v1783 = vsel %vm1043, %v1771, %v1773
    %v1784 = vsel %vm1043, %v1779, %v1771
    %v1786 = vsel %vm138, %v1768, 0
    %v1789 = vsel %vm138, %v1769, 0
    %1791 = vmatprep.subr.mxu0 %v1783
    %1792 = vmatpush1.msra.mxu0 %v1784
    %1793 = vmatprep.subr.mxu0 0.0
    %1794 = vmatpush1.msra.mxu0 0.0
    %1795 = vmatprep.subr.mxu0 0.0
    %1796 = vmatpush1.msra.mxu0 0.0
    %1797 = vmatprep.subr.mxu0 0.0
    %1798 = vmatpush1.msra.mxu0 0.0
    %1799 = vmatprep.subr.mxu0 0.0
    %1800 = vmatpush1.msra.mxu0 0.0
    %1801 = vmatprep.subr.mxu0 0.0
    %1802 = vmatpush1.msra.mxu0 0.0
    %1803 = vmatprep.subr.mxu0 0.0
    %1804 = vmatpush1.msra.mxu0 0.0
    %1805 = vmatprep.subr.mxu0 0.0
    %1806 = vmatpush1.msra.mxu0 0.0
    %1807 = vmatprep.subr.mxu0 0.0
    %1808 = vmatpush1.msra.mxu0 0.0
    %1809 = vmatprep.subr.mxu0 0.0
    %1810 = vmatpush1.msra.mxu0 0.0
    %1811 = vmatprep.subr.mxu0 0.0
    %1812 = vmatpush1.msra.mxu0 0.0
    %1813 = vmatprep.subr.mxu0 0.0
    %1814 = vmatpush1.msra.mxu0 0.0
    %1815 = vmatprep.subr.mxu0 0.0
    %1816 = vmatpush1.msra.mxu0 0.0
    %1817 = vmatprep.subr.mxu0 0.0
    %1818 = vmatpush1.msra.mxu0 0.0
    %1819 = vmatprep.subr.mxu0 0.0
    %1820 = vmatpush1.msra.mxu0 0.0
    %1821 = vmatprep.subr.mxu0 0.0
    %1822 = vmatpush1.msra.mxu0 0.0
    %1823 = vmatprep.subr.mxu0 0.0
    %1824 = vmatpush1.msra.mxu0 0.0
    %1825 = vmatprep.subr.mxu0 0.0
    %1826 = vmatpush1.msra.mxu0 0.0
    %1827 = vmatprep.subr.mxu0 0.0
    %1828 = vmatpush1.msra.mxu0 0.0
    %1829 = vmatprep.subr.mxu0 0.0
    %1830 = vmatpush1.msra.mxu0 0.0
    %1831 = vmatprep.subr.mxu0 0.0
    %1832 = vmatpush1.msra.mxu0 0.0
    %1833 = vmatprep.subr.mxu0 0.0
    %1834 = vmatpush1.msra.mxu0 0.0
    %1835 = vmatprep.subr.mxu0 0.0
    %1836 = vmatpush1.msra.mxu0 0.0
    %1837 = vmatprep.subr.mxu0 0.0
    %1838 = vmatpush1.msra.mxu0 0.0
    %1839 = vmatprep.subr.mxu0 0.0
    %1840 = vmatpush1.msra.mxu0 0.0
    %1841 = vmatprep.subr.mxu0 0.0
    %1842 = vmatpush1.msra.mxu0 0.0
    %1843 = vmatprep.subr.mxu0 0.0
    %1844 = vmatpush1.msra.mxu0 0.0
    %1845 = vmatprep.subr.mxu0 0.0
    %1846 = vmatpush1.msra.mxu0 0.0
    %1847 = vmatprep.subr.mxu0 0.0
    %1848 = vmatpush1.msra.mxu0 0.0
    %1849 = vmatprep.subr.mxu0 0.0
    %1850 = vmatpush1.msra.mxu0 0.0
    %1851 = vmatprep.subr.mxu0 0.0
    %1852 = vmatpush1.msra.mxu0 0.0
    %1853 = vmatprep.subr.mxu0 0.0
    %1854 = vmatpush1.msra.mxu0 0.0
    %1855 = vmatprep.mubr.f32.mxu0 0.0
    %1856 = vmatmul.mubr.f32.gmra.mrb[0].mxu0 %v1786
    %v1857 = vpop.f32.mrb[0].mxu0
    %v1858 = vpop.f32.mrb[0].mxu0
    %v1859 = vadd.f32 0.0, %v1858
    %1860 = vmatprep.mubr.f32.mxu0 0.0
    %1861 = vmatmul.mubr.f32.gmra.mrb[0].mxu0 %v1789
    %v1862 = vpop.f32.mrb[0].mxu0
    %v1863 = vpop.f32.mrb[0].mxu0
    %v1864 = vadd.f32 0.0, %v1863
    %1865 = vdwg.mxu0
    %1866 = vmatprep.subr.mxu0 %v1781
    %1867 = vmatpush1.msra.mxu0 %v1782
    %1868 = vmatprep.subr.mxu0 0.0
    %1869 = vmatpush1.msra.mxu0 0.0
    %1870 = vmatprep.subr.mxu0 0.0
    %1871 = vmatpush1.msra.mxu0 0.0
    %1872 = vmatprep.subr.mxu0 0.0
    %1873 = vmatpush1.msra.mxu0 0.0
    %1874 = vmatprep.subr.mxu0 0.0
    %1875 = vmatpush1.msra.mxu0 0.0
    %1876 = vmatprep.subr.mxu0 0.0
    %1877 = vmatpush1.msra.mxu0 0.0
    %1878 = vmatprep.subr.mxu0 0.0
    %1879 = vmatpush1.msra.mxu0 0.0
    %1880 = vmatprep.subr.mxu0 0.0
    %1881 = vmatpush1.msra.mxu0 0.0
    %1882 = vmatprep.subr.mxu0 0.0
    %1883 = vmatpush1.msra.mxu0 0.0
    %1884 = vmatprep.subr.mxu0 0.0
    %1885 = vmatpush1.msra.mxu0 0.0
    %1886 = vmatprep.subr.mxu0 0.0
    %1887 = vmatpush1.msra.mxu0 0.0
    %1888 = vmatprep.subr.mxu0 0.0
    %1889 = vmatpush1.msra.mxu0 0.0
    %1890 = vmatprep.subr.mxu0 0.0
    %1891 = vmatpush1.msra.mxu0 0.0
    %1892 = vmatprep.subr.mxu0 0.0
    %1893 = vmatpush1.msra.mxu0 0.0
    %1894 = vmatprep.subr.mxu0 0.0
    %1895 = vmatpush1.msra.mxu0 0.0
    %1896 = vmatprep.subr.mxu0 0.0
    %1897 = vmatpush1.msra.mxu0 0.0
    %1898 = vmatprep.subr.mxu0 0.0
    %1899 = vmatpush1.msra.mxu0 0.0
    %1900 = vmatprep.subr.mxu0 0.0
    %1901 = vmatpush1.msra.mxu0 0.0
    %1902 = vmatprep.subr.mxu0 0.0
    %1903 = vmatpush1.msra.mxu0 0.0
    %1904 = vmatprep.subr.mxu0 0.0
    %1905 = vmatpush1.msra.mxu0 0.0
    %1906 = vmatprep.subr.mxu0 0.0
    %1907 = vmatpush1.msra.mxu0 0.0
    %1908 = vmatprep.subr.mxu0 0.0
    %1909 = vmatpush1.msra.mxu0 0.0
    %1910 = vmatprep.subr.mxu0 0.0
    %1911 = vmatpush1.msra.mxu0 0.0
    %1912 = vmatprep.subr.mxu0 0.0
    %1913 = vmatpush1.msra.mxu0 0.0
    %1914 = vmatprep.subr.mxu0 0.0
    %1915 = vmatpush1.msra.mxu0 0.0
    %1916 = vmatprep.subr.mxu0 0.0
    %1917 = vmatpush1.msra.mxu0 0.0
    %1918 = vmatprep.subr.mxu0 0.0
    %1919 = vmatpush1.msra.mxu0 0.0
    %1920 = vmatprep.subr.mxu0 0.0
    %1921 = vmatpush1.msra.mxu0 0.0
    %1922 = vmatprep.subr.mxu0 0.0
    %1923 = vmatpush1.msra.mxu0 0.0
    %1924 = vmatprep.subr.mxu0 0.0
    %1925 = vmatpush1.msra.mxu0 0.0
    %1926 = vmatprep.subr.mxu0 0.0
    %1927 = vmatpush1.msra.mxu0 0.0
    %1928 = vmatprep.subr.mxu0 0.0
    %1929 = vmatpush1.msra.mxu0 0.0
    %1930 = vmatprep.mubr.f32.mxu0 0.0
    %1931 = vmatmul.mubr.f32.gmra.mrb[0].mxu0 %v1786
    %v1932 = vpop.f32.mrb[0].mxu0
    %v1933 = vadd.f32 0.0, %v1932
    %v1934 = vpop.f32.mrb[0].mxu0
    %v1935 = vadd.f32 0.0, %v1934
    %1936 = vmatprep.mubr.f32.mxu0 0.0
    %1937 = vmatmul.mubr.f32.gmra.mrb[0].mxu0 %v1789
    %v1938 = vpop.f32.mrb[0].mxu0
    %v1939 = vadd.f32 0.0, %v1938
    %v1940 = vpop.f32.mrb[0].mxu0
    %v1941 = vadd.f32 0.0, %v1940
    %1942 = vdwg.mxu0
    %1943 = vmatprep.subr.mxu0 0.0
    %1944 = vmatpush1.msra.mxu0 %v1780
    %1945 = vmatprep.subr.mxu0 0.0
    %1946 = vmatpush1.msra.mxu0 0.0
    %1947 = vmatprep.subr.mxu0 0.0
    %1948 = vmatpush1.msra.mxu0 0.0
    %1949 = vmatprep.subr.mxu0 0.0
    %1950 = vmatpush1.msra.mxu0 0.0
    %1951 = vmatprep.subr.mxu0 0.0
    %1952 = vmatpush1.msra.mxu0 0.0
    %1953 = vmatprep.subr.mxu0 0.0
    %1954 = vmatpush1.msra.mxu0 0.0
    %1955 = vmatprep.subr.mxu0 0.0
    %1956 = vmatpush1.msra.mxu0 0.0
    %1957 = vmatprep.subr.mxu0 0.0
    %1958 = vmatpush1.msra.mxu0 0.0
    %1959 = vmatprep.subr.mxu0 0.0
    %1960 = vmatpush1.msra.mxu0 0.0
    %1961 = vmatprep.subr.mxu0 0.0
    %1962 = vmatpush1.msra.mxu0 0.0
    %1963 = vmatprep.subr.mxu0 0.0
    %1964 = vmatpush1.msra.mxu0 0.0
    %1965 = vmatprep.subr.mxu0 0.0
    %1966 = vmatpush1.msra.mxu0 0.0
    %1967 = vmatprep.subr.mxu0 0.0
    %1968 = vmatpush1.msra.mxu0 0.0
    %1969 = vmatprep.subr.mxu0 0.0
    %1970 = vmatpush1.msra.mxu0 0.0
    %1971 = vmatprep.subr.mxu0 0.0
    %1972 = vmatpush1.msra.mxu0 0.0
    %1973 = vmatprep.subr.mxu0 0.0
    %1974 = vmatpush1.msra.mxu0 0.0
    %1975 = vmatprep.subr.mxu0 0.0
    %1976 = vmatpush1.msra.mxu0 0.0
    %1977 = vmatprep.subr.mxu0 0.0
    %1978 = vmatpush1.msra.mxu0 0.0
    %1979 = vmatprep.subr.mxu0 0.0
    %1980 = vmatpush1.msra.mxu0 0.0
    %1981 = vmatprep.subr.mxu0 0.0
    %1982 = vmatpush1.msra.mxu0 0.0
    %1983 = vmatprep.subr.mxu0 0.0
    %1984 = vmatpush1.msra.mxu0 0.0
    %1985 = vmatprep.subr.mxu0 0.0
    %1986 = vmatpush1.msra.mxu0 0.0
    %1987 = vmatprep.subr.mxu0 0.0
    %1988 = vmatpush1.msra.mxu0 0.0
    %1989 = vmatprep.subr.mxu0 0.0
    %1990 = vmatpush1.msra.mxu0 0.0
    %1991 = vmatprep.subr.mxu0 0.0
    %1992 = vmatpush1.msra.mxu0 0.0
    %1993 = vmatprep.subr.mxu0 0.0
    %1994 = vmatpush1.msra.mxu0 0.0
    %1995 = vmatprep.subr.mxu0 0.0
    %1996 = vmatpush1.msra.mxu0 0.0
    %1997 = vmatprep.subr.mxu0 0.0
    %1998 = vmatpush1.msra.mxu0 0.0
    %1999 = vmatprep.subr.mxu0 0.0
    %2000 = vmatpush1.msra.mxu0 0.0
    %2001 = vmatprep.subr.mxu0 0.0
    %2002 = vmatpush1.msra.mxu0 0.0
    %2003 = vmatprep.subr.mxu0 0.0
    %2004 = vmatpush1.msra.mxu0 0.0
    %2005 = vmatprep.subr.mxu0 0.0
    %2006 = vmatpush1.msra.mxu0 0.0
    %2007 = vmatprep.mubr.f32.mxu0 0.0
    %2008 = vmatmul.mubr.f32.gmra.mrb[0].mxu0 %v1786
    %v2009 = vpop.f32.mrb[0].mxu0
    %v2010 = vadd.f32 0.0, %v2009
    %v2011 = vpop.f32.mrb[0].mxu0
    %2012 = vmatprep.mubr.f32.mxu0 0.0
    %2013 = vmatmul.mubr.f32.gmra.mrb[0].mxu0 %v1789
    %v2014 = vpop.f32.mrb[0].mxu0
    %v2015 = vadd.f32 0.0, %v2014
    %v2016 = vpop.f32.mrb[0].mxu0
    %2017 = vdwg.mxu0
    %v2019 = vsel %vm138, %v1749, 0
    %v2022 = vsel %vm138, %v1750, 0
    %2024 = vmatprep.subr.mxu0 %v1765
    %2025 = vmatpush1.msra.mxu0 %v1766
    %2026 = vmatprep.subr.mxu0 0.0
    %2027 = vmatpush1.msra.mxu0 0.0
    %2028 = vmatprep.subr.mxu0 0.0
    %2029 = vmatpush1.msra.mxu0 0.0
    %2030 = vmatprep.subr.mxu0 0.0
    %2031 = vmatpush1.msra.mxu0 0.0
    %2032 = vmatprep.subr.mxu0 0.0
    %2033 = vmatpush1.msra.mxu0 0.0
    %2034 = vmatprep.subr.mxu0 0.0
    %2035 = vmatpush1.msra.mxu0 0.0
    %2036 = vmatprep.subr.mxu0 0.0
    %2037 = vmatpush1.msra.mxu0 0.0
    %2038 = vmatprep.subr.mxu0 0.0
    %2039 = vmatpush1.msra.mxu0 0.0
    %2040 = vmatprep.subr.mxu0 0.0
    %2041 = vmatpush1.msra.mxu0 0.0
    %2042 = vmatprep.subr.mxu0 0.0
    %2043 = vmatpush1.msra.mxu0 0.0
    %2044 = vmatprep.subr.mxu0 0.0
    %2045 = vmatpush1.msra.mxu0 0.0
    %2046 = vmatprep.subr.mxu0 0.0
    %2047 = vmatpush1.msra.mxu0 0.0
    %2048 = vmatprep.subr.mxu0 0.0
    %2049 = vmatpush1.msra.mxu0 0.0
    %2050 = vmatprep.subr.mxu0 0.0
    %2051 = vmatpush1.msra.mxu0 0.0
    %2052 = vmatprep.subr.mxu0 0.0
    %2053 = vmatpush1.msra.mxu0 0.0
    %2054 = vmatprep.subr.mxu0 0.0
    %2055 = vmatpush1.msra.mxu0 0.0
    %2056 = vmatprep.subr.mxu0 0.0
    %2057 = vmatpush1.msra.mxu0 0.0
    %2058 = vmatprep.subr.mxu0 0.0
    %2059 = vmatpush1.msra.mxu0 0.0
    %2060 = vmatprep.subr.mxu0 0.0
    %2061 = vmatpush1.msra.mxu0 0.0
    %2062 = vmatprep.subr.mxu0 0.0
    %2063 = vmatpush1.msra.mxu0 0.0
    %2064 = vmatprep.subr.mxu0 0.0
    %2065 = vmatpush1.msra.mxu0 0.0
    %2066 = vmatprep.subr.mxu0 0.0
    %2067 = vmatpush1.msra.mxu0 0.0
    %2068 = vmatprep.subr.mxu0 0.0
    %2069 = vmatpush1.msra.mxu0 0.0
    %2070 = vmatprep.subr.mxu0 0.0
    %2071 = vmatpush1.msra.mxu0 0.0
    %2072 = vmatprep.subr.mxu0 0.0
    %2073 = vmatpush1.msra.mxu0 0.0
    %2074 = vmatprep.subr.mxu0 0.0
    %2075 = vmatpush1.msra.mxu0 0.0
    %2076 = vmatprep.subr.mxu0 0.0
    %2077 = vmatpush1.msra.mxu0 0.0
    %2078 = vmatprep.subr.mxu0 0.0
    %2079 = vmatpush1.msra.mxu0 0.0
    %2080 = vmatprep.subr.mxu0 0.0
    %2081 = vmatpush1.msra.mxu0 0.0
    %2082 = vmatprep.subr.mxu0 0.0
    %2083 = vmatpush1.msra.mxu0 0.0
    %2084 = vmatprep.subr.mxu0 0.0
    %2085 = vmatpush1.msra.mxu0 0.0
    %2086 = vmatprep.subr.mxu0 0.0
    %2087 = vmatpush1.msra.mxu0 0.0
    %2088 = vmatprep.mubr.f32.mxu0 0.0
    %2089 = vmatmul.mubr.f32.gmra.mrb[0].mxu0 %v2019
    %v2090 = vpop.f32.mrb[0].mxu0
    %v2091 = vpop.f32.mrb[0].mxu0
    %v2092 = vadd.f32 %v1859, %v2091
    %2093 = vmatprep.mubr.f32.mxu0 0.0
    %2094 = vmatmul.mubr.f32.gmra.mrb[0].mxu0 %v2022
    %v2095 = vpop.f32.mrb[0].mxu0
    %v2096 = vpop.f32.mrb[0].mxu0
    %v2097 = vadd.f32 %v1864, %v2096
    %2098 = vdwg.mxu0
    %2099 = vmatprep.subr.mxu0 %v1763
    %2100 = vmatpush1.msra.mxu0 %v1764
    %2101 = vmatprep.subr.mxu0 0.0
    %2102 = vmatpush1.msra.mxu0 0.0
    %2103 = vmatprep.subr.mxu0 0.0
    %2104 = vmatpush1.msra.mxu0 0.0
    %2105 = vmatprep.subr.mxu0 0.0
    %2106 = vmatpush1.msra.mxu0 0.0
    %2107 = vmatprep.subr.mxu0 0.0
    %2108 = vmatpush1.msra.mxu0 0.0
    %2109 = vmatprep.subr.mxu0 0.0
    %2110 = vmatpush1.msra.mxu0 0.0
    %2111 = vmatprep.subr.mxu0 0.0
    %2112 = vmatpush1.msra.mxu0 0.0
    %2113 = vmatprep.subr.mxu0 0.0
    %2114 = vmatpush1.msra.mxu0 0.0
    %2115 = vmatprep.subr.mxu0 0.0
    %2116 = vmatpush1.msra.mxu0 0.0
    %2117 = vmatprep.subr.mxu0 0.0
    %2118 = vmatpush1.msra.mxu0 0.0
    %2119 = vmatprep.subr.mxu0 0.0
    %2120 = vmatpush1.msra.mxu0 0.0
    %2121 = vmatprep.subr.mxu0 0.0
    %2122 = vmatpush1.msra.mxu0 0.0
    %2123 = vmatprep.subr.mxu0 0.0
    %2124 = vmatpush1.msra.mxu0 0.0
    %2125 = vmatprep.subr.mxu0 0.0
    %2126 = vmatpush1.msra.mxu0 0.0
    %2127 = vmatprep.subr.mxu0 0.0
    %2128 = vmatpush1.msra.mxu0 0.0
    %2129 = vmatprep.subr.mxu0 0.0
    %2130 = vmatpush1.msra.mxu0 0.0
    %2131 = vmatprep.subr.mxu0 0.0
    %2132 = vmatpush1.msra.mxu0 0.0
    %2133 = vmatprep.subr.mxu0 0.0
    %2134 = vmatpush1.msra.mxu0 0.0
    %2135 = vmatprep.subr.mxu0 0.0
    %2136 = vmatpush1.msra.mxu0 0.0
    %2137 = vmatprep.subr.mxu0 0.0
    %2138 = vmatpush1.msra.mxu0 0.0
    %2139 = vmatprep.subr.mxu0 0.0
    %2140 = vmatpush1.msra.mxu0 0.0
    %2141 = vmatprep.subr.mxu0 0.0
    %2142 = vmatpush1.msra.mxu0 0.0
    %2143 = vmatprep.subr.mxu0 0.0
    %2144 = vmatpush1.msra.mxu0 0.0
    %2145 = vmatprep.subr.mxu0 0.0
    %2146 = vmatpush1.msra.mxu0 0.0
    %2147 = vmatprep.subr.mxu0 0.0
    %2148 = vmatpush1.msra.mxu0 0.0
    %2149 = vmatprep.subr.mxu0 0.0
    %2150 = vmatpush1.msra.mxu0 0.0
    %2151 = vmatprep.subr.mxu0 0.0
    %2152 = vmatpush1.msra.mxu0 0.0
    %2153 = vmatprep.subr.mxu0 0.0
    %2154 = vmatpush1.msra.mxu0 0.0
    %2155 = vmatprep.subr.mxu0 0.0
    %2156 = vmatpush1.msra.mxu0 0.0
    %2157 = vmatprep.subr.mxu0 0.0
    %2158 = vmatpush1.msra.mxu0 0.0
    %2159 = vmatprep.subr.mxu0 0.0
    %2160 = vmatpush1.msra.mxu0 0.0
    %2161 = vmatprep.subr.mxu0 0.0
    %2162 = vmatpush1.msra.mxu0 0.0
    %2163 = vmatprep.mubr.f32.mxu0 0.0
    %2164 = vmatmul.mubr.f32.gmra.mrb[0].mxu0 %v2019
    %v2165 = vpop.f32.mrb[0].mxu0
    %v2166 = vadd.f32 %v1933, %v2165
    %v2167 = vpop.f32.mrb[0].mxu0
    %v2168 = vadd.f32 %v1935, %v2167
    %2169 = vmatprep.mubr.f32.mxu0 0.0
    %2170 = vmatmul.mubr.f32.gmra.mrb[0].mxu0 %v2022
    %v2171 = vpop.f32.mrb[0].mxu0
    %v2172 = vadd.f32 %v1939, %v2171
    %v2173 = vpop.f32.mrb[0].mxu0
    %v2174 = vadd.f32 %v1941, %v2173
    %2175 = vdwg.mxu0
    %2176 = vmatprep.subr.mxu0 0.0
    %2177 = vmatpush1.msra.mxu0 %v1762
    %2178 = vmatprep.subr.mxu0 0.0
    %2179 = vmatpush1.msra.mxu0 0.0
    %2180 = vmatprep.subr.mxu0 0.0
    %2181 = vmatpush1.msra.mxu0 0.0
    %2182 = vmatprep.subr.mxu0 0.0
    %2183 = vmatpush1.msra.mxu0 0.0
    %2184 = vmatprep.subr.mxu0 0.0
    %2185 = vmatpush1.msra.mxu0 0.0
    %2186 = vmatprep.subr.mxu0 0.0
    %2187 = vmatpush1.msra.mxu0 0.0
    %2188 = vmatprep.subr.mxu0 0.0
    %2189 = vmatpush1.msra.mxu0 0.0
    %2190 = vmatprep.subr.mxu0 0.0
    %2191 = vmatpush1.msra.mxu0 0.0
    %2192 = vmatprep.subr.mxu0 0.0
    %2193 = vmatpush1.msra.mxu0 0.0
    %2194 = vmatprep.subr.mxu0 0.0
    %2195 = vmatpush1.msra.mxu0 0.0
    %2196 = vmatprep.subr.mxu0 0.0
    %2197 = vmatpush1.msra.mxu0 0.0
    %2198 = vmatprep.subr.mxu0 0.0
    %2199 = vmatpush1.msra.mxu0 0.0
    %2200 = vmatprep.subr.mxu0 0.0
    %2201 = vmatpush1.msra.mxu0 0.0
    %2202 = vmatprep.subr.mxu0 0.0
    %2203 = vmatpush1.msra.mxu0 0.0
    %2204 = vmatprep.subr.mxu0 0.0
    %2205 = vmatpush1.msra.mxu0 0.0
    %2206 = vmatprep.subr.mxu0 0.0
    %2207 = vmatpush1.msra.mxu0 0.0
    %2208 = vmatprep.subr.mxu0 0.0
    %2209 = vmatpush1.msra.mxu0 0.0
    %2210 = vmatprep.subr.mxu0 0.0
    %2211 = vmatpush1.msra.mxu0 0.0
    %2212 = vmatprep.subr.mxu0 0.0
    %2213 = vmatpush1.msra.mxu0 0.0
    %2214 = vmatprep.subr.mxu0 0.0
    %2215 = vmatpush1.msra.mxu0 0.0
    %2216 = vmatprep.subr.mxu0 0.0
    %2217 = vmatpush1.msra.mxu0 0.0
    %2218 = vmatprep.subr.mxu0 0.0
    %2219 = vmatpush1.msra.mxu0 0.0
    %2220 = vmatprep.subr.mxu0 0.0
    %2221 = vmatpush1.msra.mxu0 0.0
    %2222 = vmatprep.subr.mxu0 0.0
    %2223 = vmatpush1.msra.mxu0 0.0
    %2224 = vmatprep.subr.mxu0 0.0
    %2225 = vmatpush1.msra.mxu0 0.0
    %2226 = vmatprep.subr.mxu0 0.0
    %2227 = vmatpush1.msra.mxu0 0.0
    %2228 = vmatprep.subr.mxu0 0.0
    %2229 = vmatpush1.msra.mxu0 0.0
    %2230 = vmatprep.subr.mxu0 0.0
    %2231 = vmatpush1.msra.mxu0 0.0
    %2232 = vmatprep.subr.mxu0 0.0
    %2233 = vmatpush1.msra.mxu0 0.0
    %2234 = vmatprep.subr.mxu0 0.0
    %2235 = vmatpush1.msra.mxu0 0.0
    %2236 = vmatprep.subr.mxu0 0.0
    %2237 = vmatpush1.msra.mxu0 0.0
    %2238 = vmatprep.subr.mxu0 0.0
    %2239 = vmatpush1.msra.mxu0 0.0
    %2240 = vmatprep.mubr.f32.mxu0 0.0
    %2241 = vmatmul.mubr.f32.gmra.mrb[0].mxu0 %v2019
    %v2242 = vpop.f32.mrb[0].mxu0
    %v2243 = vadd.f32 %v2010, %v2242
    %v2244 = vpop.f32.mrb[0].mxu0
    %2245 = vmatprep.mubr.f32.mxu0 0.0
    %2246 = vmatmul.mubr.f32.gmra.mrb[0].mxu0 %v2022
    %v2247 = vpop.f32.mrb[0].mxu0
    %v2248 = vadd.f32 %v2015, %v2247
    %v2249 = vpop.f32.mrb[0].mxu0
    %2250 = vdwg.mxu0
    %s2251 = scalar_lea.vmem %s9, 32
    %v2252 = vld [vmem:[%s2251] sm:$0xff]
    %v2253 = vld [vmem:[%s2251 + $0x8] sm:$0xff]
    %v2255 = vsel %vm138, %v2252, 0
    %v2258 = vsel %vm138, %v2253, 0
    %2260 = vmatprep.subr.mxu0 %v1745
    %2261 = vmatpush1.msra.mxu0 %v1744
    %2262 = vmatprep.subr.mxu0 0.0
    %2263 = vmatpush1.msra.mxu0 0.0
    %2264 = vmatprep.subr.mxu0 0.0
    %2265 = vmatpush1.msra.mxu0 0.0
    %2266 = vmatprep.subr.mxu0 0.0
    %2267 = vmatpush1.msra.mxu0 0.0
    %2268 = vmatprep.subr.mxu0 0.0
    %2269 = vmatpush1.msra.mxu0 0.0
    %2270 = vmatprep.subr.mxu0 0.0
    %2271 = vmatpush1.msra.mxu0 0.0
    %2272 = vmatprep.subr.mxu0 0.0
    %2273 = vmatpush1.msra.mxu0 0.0
    %2274 = vmatprep.subr.mxu0 0.0
    %2275 = vmatpush1.msra.mxu0 0.0
    %2276 = vmatprep.subr.mxu0 0.0
    %2277 = vmatpush1.msra.mxu0 0.0
    %2278 = vmatprep.subr.mxu0 0.0
    %2279 = vmatpush1.msra.mxu0 0.0
    %2280 = vmatprep.subr.mxu0 0.0
    %2281 = vmatpush1.msra.mxu0 0.0
    %2282 = vmatprep.subr.mxu0 0.0
    %2283 = vmatpush1.msra.mxu0 0.0
    %2284 = vmatprep.subr.mxu0 0.0
    %2285 = vmatpush1.msra.mxu0 0.0
    %2286 = vmatprep.subr.mxu0 0.0
    %2287 = vmatpush1.msra.mxu0 0.0
    %2288 = vmatprep.subr.mxu0 0.0
    %2289 = vmatpush1.msra.mxu0 0.0
    %2290 = vmatprep.subr.mxu0 0.0
    %2291 = vmatpush1.msra.mxu0 0.0
    %2292 = vmatprep.subr.mxu0 0.0
    %2293 = vmatpush1.msra.mxu0 0.0
    %2294 = vmatprep.subr.mxu0 0.0
    %2295 = vmatpush1.msra.mxu0 0.0
    %2296 = vmatprep.subr.mxu0 0.0
    %2297 = vmatpush1.msra.mxu0 0.0
    %2298 = vmatprep.subr.mxu0 0.0
    %2299 = vmatpush1.msra.mxu0 0.0
    %2300 = vmatprep.subr.mxu0 0.0
    %2301 = vmatpush1.msra.mxu0 0.0
    %2302 = vmatprep.subr.mxu0 0.0
    %2303 = vmatpush1.msra.mxu0 0.0
    %2304 = vmatprep.subr.mxu0 0.0
    %2305 = vmatpush1.msra.mxu0 0.0
    %2306 = vmatprep.subr.mxu0 0.0
    %2307 = vmatpush1.msra.mxu0 0.0
    %2308 = vmatprep.subr.mxu0 0.0
    %2309 = vmatpush1.msra.mxu0 0.0
    %2310 = vmatprep.subr.mxu0 0.0
    %2311 = vmatpush1.msra.mxu0 0.0
    %2312 = vmatprep.subr.mxu0 0.0
    %2313 = vmatpush1.msra.mxu0 0.0
    %2314 = vmatprep.subr.mxu0 0.0
    %2315 = vmatpush1.msra.mxu0 0.0
    %2316 = vmatprep.subr.mxu0 0.0
    %2317 = vmatpush1.msra.mxu0 0.0
    %2318 = vmatprep.subr.mxu0 0.0
    %2319 = vmatpush1.msra.mxu0 0.0
    %2320 = vmatprep.subr.mxu0 0.0
    %2321 = vmatpush1.msra.mxu0 0.0
    %2322 = vmatprep.subr.mxu0 0.0
    %2323 = vmatpush1.msra.mxu0 0.0
    %2324 = vmatprep.mubr.f32.mxu0 0.0
    %2325 = vmatmul.mubr.f32.gmra.mrb[0].mxu0 %v2255
    %v2326 = vpop.f32.mrb[0].mxu0
    %v2327 = vpop.f32.mrb[0].mxu0
    %v2328 = vadd.f32 0.0, %v2327
    %2329 = vmatprep.mubr.f32.mxu0 0.0
    %2330 = vmatmul.mubr.f32.gmra.mrb[0].mxu0 %v2258
    %v2331 = vpop.f32.mrb[0].mxu0
    %v2332 = vpop.f32.mrb[0].mxu0
    %v2333 = vadd.f32 0.0, %v2332
    %2334 = vdwg.mxu0
    %2335 = vmatprep.subr.mxu0 %v1747
    %2336 = vmatpush1.msra.mxu0 %v1746
    %2337 = vmatprep.subr.mxu0 0.0
    %2338 = vmatpush1.msra.mxu0 0.0
    %2339 = vmatprep.subr.mxu0 0.0
    %2340 = vmatpush1.msra.mxu0 0.0
    %2341 = vmatprep.subr.mxu0 0.0
    %2342 = vmatpush1.msra.mxu0 0.0
    %2343 = vmatprep.subr.mxu0 0.0
    %2344 = vmatpush1.msra.mxu0 0.0
    %2345 = vmatprep.subr.mxu0 0.0
    %2346 = vmatpush1.msra.mxu0 0.0
    %2347 = vmatprep.subr.mxu0 0.0
    %2348 = vmatpush1.msra.mxu0 0.0
    %2349 = vmatprep.subr.mxu0 0.0
    %2350 = vmatpush1.msra.mxu0 0.0
    %2351 = vmatprep.subr.mxu0 0.0
    %2352 = vmatpush1.msra.mxu0 0.0
    %2353 = vmatprep.subr.mxu0 0.0
    %2354 = vmatpush1.msra.mxu0 0.0
    %2355 = vmatprep.subr.mxu0 0.0
    %2356 = vmatpush1.msra.mxu0 0.0
    %2357 = vmatprep.subr.mxu0 0.0
    %2358 = vmatpush1.msra.mxu0 0.0
    %2359 = vmatprep.subr.mxu0 0.0
    %2360 = vmatpush1.msra.mxu0 0.0
    %2361 = vmatprep.subr.mxu0 0.0
    %2362 = vmatpush1.msra.mxu0 0.0
    %2363 = vmatprep.subr.mxu0 0.0
    %2364 = vmatpush1.msra.mxu0 0.0
    %2365 = vmatprep.subr.mxu0 0.0
    %2366 = vmatpush1.msra.mxu0 0.0
    %2367 = vmatprep.subr.mxu0 0.0
    %2368 = vmatpush1.msra.mxu0 0.0
    %2369 = vmatprep.subr.mxu0 0.0
    %2370 = vmatpush1.msra.mxu0 0.0
    %2371 = vmatprep.subr.mxu0 0.0
    %2372 = vmatpush1.msra.mxu0 0.0
    %2373 = vmatprep.subr.mxu0 0.0
    %2374 = vmatpush1.msra.mxu0 0.0
    %2375 = vmatprep.subr.mxu0 0.0
    %2376 = vmatpush1.msra.mxu0 0.0
    %2377 = vmatprep.subr.mxu0 0.0
    %2378 = vmatpush1.msra.mxu0 0.0
    %2379 = vmatprep.subr.mxu0 0.0
    %2380 = vmatpush1.msra.mxu0 0.0
    %2381 = vmatprep.subr.mxu0 0.0
    %2382 = vmatpush1.msra.mxu0 0.0
    %2383 = vmatprep.subr.mxu0 0.0
    %2384 = vmatpush1.msra.mxu0 0.0
    %2385 = vmatprep.subr.mxu0 0.0
    %2386 = vmatpush1.msra.mxu0 0.0
    %2387 = vmatprep.subr.mxu0 0.0
    %2388 = vmatpush1.msra.mxu0 0.0
    %2389 = vmatprep.subr.mxu0 0.0
    %2390 = vmatpush1.msra.mxu0 0.0
    %2391 = vmatprep.subr.mxu0 0.0
    %2392 = vmatpush1.msra.mxu0 0.0
    %2393 = vmatprep.subr.mxu0 0.0
    %2394 = vmatpush1.msra.mxu0 0.0
    %2395 = vmatprep.subr.mxu0 0.0
    %2396 = vmatpush1.msra.mxu0 0.0
    %2397 = vmatprep.subr.mxu0 0.0
    %2398 = vmatpush1.msra.mxu0 0.0
    %2399 = vmatprep.mubr.f32.mxu0 0.0
    %2400 = vmatmul.mubr.f32.gmra.mrb[0].mxu0 %v2255
    %v2401 = vpop.f32.mrb[0].mxu0
    %v2402 = vadd.f32 0.0, %v2401
    %v2403 = vpop.f32.mrb[0].mxu0
    %v2404 = vadd.f32 0.0, %v2403
    %2405 = vmatprep.mubr.f32.mxu0 0.0
    %2406 = vmatmul.mubr.f32.gmra.mrb[0].mxu0 %v2258
    %v2407 = vpop.f32.mrb[0].mxu0
    %v2408 = vadd.f32 0.0, %v2407
    %v2409 = vpop.f32.mrb[0].mxu0
    %v2410 = vadd.f32 0.0, %v2409
    %2411 = vdwg.mxu0
    %2412 = vmatprep.subr.mxu0 0.0
    %2413 = vmatpush1.msra.mxu0 %v1748
    %2414 = vmatprep.subr.mxu0 0.0
    %2415 = vmatpush1.msra.mxu0 0.0
    %2416 = vmatprep.subr.mxu0 0.0
    %2417 = vmatpush1.msra.mxu0 0.0
    %2418 = vmatprep.subr.mxu0 0.0
    %2419 = vmatpush1.msra.mxu0 0.0
    %2420 = vmatprep.subr.mxu0 0.0
    %2421 = vmatpush1.msra.mxu0 0.0
    %2422 = vmatprep.subr.mxu0 0.0
    %2423 = vmatpush1.msra.mxu0 0.0
    %2424 = vmatprep.subr.mxu0 0.0
    %2425 = vmatpush1.msra.mxu0 0.0
    %2426 = vmatprep.subr.mxu0 0.0
    %2427 = vmatpush1.msra.mxu0 0.0
    %2428 = vmatprep.subr.mxu0 0.0
    %2429 = vmatpush1.msra.mxu0 0.0
    %2430 = vmatprep.subr.mxu0 0.0
    %2431 = vmatpush1.msra.mxu0 0.0
    %2432 = vmatprep.subr.mxu0 0.0
    %2433 = vmatpush1.msra.mxu0 0.0
    %2434 = vmatprep.subr.mxu0 0.0
    %2435 = vmatpush1.msra.mxu0 0.0
    %2436 = vmatprep.subr.mxu0 0.0
    %2437 = vmatpush1.msra.mxu0 0.0
    %2438 = vmatprep.subr.mxu0 0.0
    %2439 = vmatpush1.msra.mxu0 0.0
    %2440 = vmatprep.subr.mxu0 0.0
    %2441 = vmatpush1.msra.mxu0 0.0
    %2442 = vmatprep.subr.mxu0 0.0
    %2443 = vmatpush1.msra.mxu0 0.0
    %2444 = vmatprep.subr.mxu0 0.0
    %2445 = vmatpush1.msra.mxu0 0.0
    %2446 = vmatprep.subr.mxu0 0.0
    %2447 = vmatpush1.msra.mxu0 0.0
    %2448 = vmatprep.subr.mxu0 0.0
    %2449 = vmatpush1.msra.mxu0 0.0
    %2450 = vmatprep.subr.mxu0 0.0
    %2451 = vmatpush1.msra.mxu0 0.0
    %2452 = vmatprep.subr.mxu0 0.0
    %2453 = vmatpush1.msra.mxu0 0.0
    %2454 = vmatprep.subr.mxu0 0.0
    %2455 = vmatpush1.msra.mxu0 0.0
    %2456 = vmatprep.subr.mxu0 0.0
    %2457 = vmatpush1.msra.mxu0 0.0
    %2458 = vmatprep.subr.mxu0 0.0
    %2459 = vmatpush1.msra.mxu0 0.0
    %2460 = vmatprep.subr.mxu0 0.0
    %2461 = vmatpush1.msra.mxu0 0.0
    %2462 = vmatprep.subr.mxu0 0.0
    %2463 = vmatpush1.msra.mxu0 0.0
    %2464 = vmatprep.subr.mxu0 0.0
    %2465 = vmatpush1.msra.mxu0 0.0
    %2466 = vmatprep.subr.mxu0 0.0
    %2467 = vmatpush1.msra.mxu0 0.0
    %2468 = vmatprep.subr.mxu0 0.0
    %2469 = vmatpush1.msra.mxu0 0.0
    %2470 = vmatprep.subr.mxu0 0.0
    %2471 = vmatpush1.msra.mxu0 0.0
    %2472 = vmatprep.subr.mxu0 0.0
    %2473 = vmatpush1.msra.mxu0 0.0
    %2474 = vmatprep.subr.mxu0 0.0
    %2475 = vmatpush1.msra.mxu0 0.0
    %2476 = vmatprep.mubr.f32.mxu0 0.0
    %2477 = vmatmul.mubr.f32.gmra.mrb[0].mxu0 %v2255
    %v2478 = vpop.f32.mrb[0].mxu0
    %v2479 = vadd.f32 0.0, %v2478
    %v2480 = vpop.f32.mrb[0].mxu0
    %2481 = vmatprep.mubr.f32.mxu0 0.0
    %2482 = vmatmul.mubr.f32.gmra.mrb[0].mxu0 %v2258
    %v2483 = vpop.f32.mrb[0].mxu0
    %v2484 = vadd.f32 0.0, %v2483
    %v2485 = vpop.f32.mrb[0].mxu0
    %2486 = vdwg.mxu0
    %v2487 = vadd.f32 %v2092, %v2328
    %v2488 = vadd.f32 %v2166, %v2402
    %v2489 = vadd.f32 %v2168, %v2404
    %v2490 = vadd.f32 %v2243, %v2479
    %v2491 = vadd.f32 %v2097, %v2333
    %v2492 = vadd.f32 %v2172, %v2408
    %v2493 = vadd.f32 %v2174, %v2410
    %v2494 = vadd.f32 %v2248, %v2484
    %v2495 = vld [vmem:[%s10] sm:$0xff]
    %v2496 = vld [vmem:[%s10 + $0x8] sm:$0xff]
    %2498 = vset.pattern.permute.xlu0 0
    %2499 = vperm.xlu0 %2498, %v2495
    %v2500 = vpop.permute.xlu0 %2499
    %2503 = vset.pattern.permute.xlu0 0
    %2504 = vperm.xlu0 %2503, %v2496
    %v2505 = vpop.permute.xlu0 %2504
    %v2507 = vadd.f32 %v2487, %v2500
    %v2508 = vadd.f32 %v2488, %v2500
    %v2509 = vadd.f32 %v2489, %v2500
    %v2510 = vadd.f32 %v2490, %v2500
    %v2511 = vadd.f32 %v2491, %v2505
    %v2512 = vadd.f32 %v2492, %v2505
    %v2513 = vadd.f32 %v2493, %v2505
    %v2514 = vadd.f32 %v2494, %v2505
    %v2515 = vadd.f32 %v2507, %v212
    %v2516 = vadd.f32 %v2508, %v214
    %v2517 = vadd.f32 %v2509, %v289
    %v2518 = vadd.f32 %v2510, %v291
    %v2519 = vadd.f32 %v2511, %v218
    %v2520 = vadd.f32 %v2512, %v220
    %v2521 = vadd.f32 %v2513, %v295
    %v2522 = vadd.f32 %v2514, %v297
    %v2523 = vld [vmem:[#allocation2] sm:$0xff]
    %v2524 = vld [vmem:[#allocation2 + $0x8] sm:$0xff]
    %v2525 = vld [vmem:[#allocation2 + $0x10] sm:$0xff]
    %v2526 = vld [vmem:[#allocation2 + $0x18] sm:$0xff]
    %v2527 = vld [vmem:[#allocation2 + $0x20] sm:$0xff]
    %v2528 = vld [vmem:[#allocation2 + $0x28] sm:$0xff]
    %v2529 = vld [vmem:[#allocation2 + $0x30] sm:$0xff]
    %v2530 = vld [vmem:[#allocation2 + $0x38] sm:$0xff]
    %v2531 = vld [vmem:[#allocation2 + $0x40] sm:$0xff]
    %v2532 = vld [vmem:[#allocation2 + $0x48] sm:$0xff]
    %v2533 = vld [vmem:[#allocation2 + $0x50] sm:$0xff]
    %v2534 = vld [vmem:[#allocation2 + $0x58] sm:$0xff]
    %v2535 = vld [vmem:[#allocation2 + $0x60] sm:$0xff]
    %v2536 = vld [vmem:[#allocation2 + $0x68] sm:$0xff]
    %v2537 = vld [vmem:[#allocation2 + $0x70] sm:$0xff]
    %v2538 = vld [vmem:[#allocation2 + $0x78] sm:$0xff]
    %v2539 = vld [vmem:[#allocation2 + $0x80] sm:$0xff]
    %v2540 = vld [vmem:[#allocation2 + $0x88] sm:$0xff]
    %v2541 = vld [vmem:[#allocation2 + $0x90] sm:$0xff]
    %v2542 = vld [vmem:[#allocation2 + $0x98] sm:$0xff]
    %v2543 = vld [vmem:[#allocation2 + $0xa0] sm:$0xff]
    %v2544 = vld [vmem:[#allocation2 + $0xa8] sm:$0xff]
    %v2545 = vld [vmem:[#allocation2 + $0xb0] sm:$0xff]
    %v2546 = vld [vmem:[#allocation2 + $0xb8] sm:$0xff]
    %v2547 = vld [vmem:[#allocation2 + $0xc0] sm:$0xff]
    %v2548 = vld [vmem:[#allocation2 + $0xc8] sm:$0xff]
    %v2549 = vld [vmem:[#allocation2 + $0xd0] sm:$0xff]
    %v2550 = vld [vmem:[#allocation2 + $0xd8] sm:$0xff]
    %v2551 = vld [vmem:[#allocation2 + $0xe0] sm:$0xff]
    %v2552 = vld [vmem:[#allocation2 + $0xe8] sm:$0xff]
    %v2553 = vld [vmem:[#allocation2 + $0xf0] sm:$0xff]
    %v2554 = vld [vmem:[#allocation2 + $0xf8] sm:$0xff]
    %v2555 = vld [vmem:[#allocation2 + $0x100] sm:$0xff]
    %v2556 = vld [vmem:[#allocation2 + $0x108] sm:$0xff]
    %v2557 = vld [vmem:[#allocation2 + $0x110] sm:$0xff]
    %v2558 = vld [vmem:[#allocation2 + $0x118] sm:$0xff]
    %v2559 = vld [vmem:[#allocation2 + $0x120] sm:$0xff]
    %v2560 = vld [vmem:[#allocation2 + $0x128] sm:$0xff]
    %v2561 = vld [vmem:[#allocation2 + $0x130] sm:$0xff]
    %v2562 = vld [vmem:[#allocation2 + $0x138] sm:$0xff]
    %v2563 = vld [vmem:[#allocation2 + $0x140] sm:$0xff]
    %v2564 = vld [vmem:[#allocation2 + $0x148] sm:$0xff]
    %v2565 = vld [vmem:[#allocation2 + $0x150] sm:$0xff]
    %v2566 = vld [vmem:[#allocation2 + $0x158] sm:$0xff]
    %v2567 = vld [vmem:[#allocation2 + $0x160] sm:$0xff]
    %v2568 = vld [vmem:[#allocation2 + $0x168] sm:$0xff]
    %v2569 = vld [vmem:[#allocation2 + $0x170] sm:$0xff]
    %v2570 = vld [vmem:[#allocation2 + $0x178] sm:$0xff]
    %v2571 = vld [vmem:[#allocation2 + $0x180] sm:$0xff]
    %v2572 = vld [vmem:[#allocation2 + $0x188] sm:$0xff]
    %v2573 = vld [vmem:[#allocation2 + $0x190] sm:$0xff]
    %v2574 = vld [vmem:[#allocation2 + $0x198] sm:$0xff]
    %v2575 = vld [vmem:[#allocation2 + $0x1a0] sm:$0xff]
    %v2576 = vld [vmem:[#allocation2 + $0x1a8] sm:$0xff]
    %v2577 = vld [vmem:[#allocation2 + $0x1b0] sm:$0xff]
    %v2578 = vld [vmem:[#allocation2 + $0x1b8] sm:$0xff]
    %v2579 = vld [vmem:[#allocation2 + $0x1c0] sm:$0xff]
    %v2580 = vld [vmem:[#allocation2 + $0x1c8] sm:$0xff]
    %v2581 = vld [vmem:[#allocation2 + $0x1d0] sm:$0xff]
    %v2582 = vld [vmem:[#allocation2 + $0x1d8] sm:$0xff]
    %v2583 = vld [vmem:[#allocation2 + $0x1e0] sm:$0xff]
    %v2584 = vld [vmem:[#allocation2 + $0x1e8] sm:$0xff]
    %v2585 = vld [vmem:[#allocation2 + $0x1f0] sm:$0xff]
    %v2586 = vld [vmem:[#allocation2 + $0x1f8] sm:$0xff]
    %2587 = vmatprep.subr.mxu0 0.0
    %2588 = vmatpush1.msra.mxu0 %v2523
    %2589 = vmatprep.subr.mxu0 0.0
    %2590 = vmatpush1.msra.mxu0 %v2524
    %2591 = vmatprep.subr.mxu0 0.0
    %2592 = vmatpush1.msra.mxu0 %v2525
    %2593 = vmatprep.subr.mxu0 0.0
    %2594 = vmatpush1.msra.mxu0 %v2526
    %2595 = vmatprep.subr.mxu0 0.0
    %2596 = vmatpush1.msra.mxu0 %v2527
    %2597 = vmatprep.subr.mxu0 0.0
    %2598 = vmatpush1.msra.mxu0 %v2528
    %2599 = vmatprep.subr.mxu0 0.0
    %2600 = vmatpush1.msra.mxu0 %v2529
    %2601 = vmatprep.subr.mxu0 0.0
    %2602 = vmatpush1.msra.mxu0 %v2530
    %2603 = vmatprep.subr.mxu0 0.0
    %2604 = vmatpush1.msra.mxu0 %v2531
    %2605 = vmatprep.subr.mxu0 0.0
    %2606 = vmatpush1.msra.mxu0 %v2532
    %2607 = vmatprep.subr.mxu0 0.0
    %2608 = vmatpush1.msra.mxu0 %v2533
    %2609 = vmatprep.subr.mxu0 0.0
    %2610 = vmatpush1.msra.mxu0 %v2534
    %2611 = vmatprep.subr.mxu0 0.0
    %2612 = vmatpush1.msra.mxu0 %v2535
    %2613 = vmatprep.subr.mxu0 0.0
    %2614 = vmatpush1.msra.mxu0 %v2536
    %2615 = vmatprep.subr.mxu0 0.0
    %2616 = vmatpush1.msra.mxu0 %v2537
    %2617 = vmatprep.subr.mxu0 0.0
    %2618 = vmatpush1.msra.mxu0 %v2538
    %2619 = vmatprep.subr.mxu0 0.0
    %2620 = vmatpush1.msra.mxu0 %v2539
    %2621 = vmatprep.subr.mxu0 0.0
    %2622 = vmatpush1.msra.mxu0 %v2540
    %2623 = vmatprep.subr.mxu0 0.0
    %2624 = vmatpush1.msra.mxu0 %v2541
    %2625 = vmatprep.subr.mxu0 0.0
    %2626 = vmatpush1.msra.mxu0 %v2542
    %2627 = vmatprep.subr.mxu0 0.0
    %2628 = vmatpush1.msra.mxu0 %v2543
    %2629 = vmatprep.subr.mxu0 0.0
    %2630 = vmatpush1.msra.mxu0 %v2544
    %2631 = vmatprep.subr.mxu0 0.0
    %2632 = vmatpush1.msra.mxu0 %v2545
    %2633 = vmatprep.subr.mxu0 0.0
    %2634 = vmatpush1.msra.mxu0 %v2546
    %2635 = vmatprep.subr.mxu0 0.0
    %2636 = vmatpush1.msra.mxu0 %v2547
    %2637 = vmatprep.subr.mxu0 0.0
    %2638 = vmatpush1.msra.mxu0 %v2548
    %2639 = vmatprep.subr.mxu0 0.0
    %2640 = vmatpush1.msra.mxu0 %v2549
    %2641 = vmatprep.subr.mxu0 0.0
    %2642 = vmatpush1.msra.mxu0 %v2550
    %2643 = vmatprep.subr.mxu0 0.0
    %2644 = vmatpush1.msra.mxu0 %v2551
    %2645 = vmatprep.subr.mxu0 0.0
    %2646 = vmatpush1.msra.mxu0 %v2552
    %2647 = vmatprep.subr.mxu0 0.0
    %2648 = vmatpush1.msra.mxu0 %v2553
    %2649 = vmatprep.subr.mxu0 0.0
    %2650 = vmatpush1.msra.mxu0 %v2554
    %2651 = vmatprep.mubr.f32.mxu0 %v2516
    %2652 = vmatmul.mubr.f32.gmra.mrb[0].mxu0 %v2515
    %v2653 = vpop.f32.mrb[0].mxu0
    %v2654 = vadd.f32 0.0, %v2653
    %v2655 = vpop.f32.mrb[0].mxu0
    %2656 = vmatprep.mubr.f32.mxu0 %v2520
    %2657 = vmatmul.mubr.f32.gmra.mrb[0].mxu0 %v2519
    %v2658 = vpop.f32.mrb[0].mxu0
    %v2659 = vadd.f32 0.0, %v2658
    %v2660 = vpop.f32.mrb[0].mxu0
    %2661 = vdwg.mxu0
    %2662 = vmatprep.subr.mxu0 0.0
    %2663 = vmatpush1.msra.mxu0 %v2555
    %2664 = vmatprep.subr.mxu0 0.0
    %2665 = vmatpush1.msra.mxu0 %v2556
    %2666 = vmatprep.subr.mxu0 0.0
    %2667 = vmatpush1.msra.mxu0 %v2557
    %2668 = vmatprep.subr.mxu0 0.0
    %2669 = vmatpush1.msra.mxu0 %v2558
    %2670 = vmatprep.subr.mxu0 0.0
    %2671 = vmatpush1.msra.mxu0 %v2559
    %2672 = vmatprep.subr.mxu0 0.0
    %2673 = vmatpush1.msra.mxu0 %v2560
    %2674 = vmatprep.subr.mxu0 0.0
    %2675 = vmatpush1.msra.mxu0 %v2561
    %2676 = vmatprep.subr.mxu0 0.0
    %2677 = vmatpush1.msra.mxu0 %v2562
    %2678 = vmatprep.subr.mxu0 0.0
    %2679 = vmatpush1.msra.mxu0 %v2563
    %2680 = vmatprep.subr.mxu0 0.0
    %2681 = vmatpush1.msra.mxu0 %v2564
    %2682 = vmatprep.subr.mxu0 0.0
    %2683 = vmatpush1.msra.mxu0 %v2565
    %2684 = vmatprep.subr.mxu0 0.0
    %2685 = vmatpush1.msra.mxu0 %v2566
    %2686 = vmatprep.subr.mxu0 0.0
    %2687 = vmatpush1.msra.mxu0 %v2567
    %2688 = vmatprep.subr.mxu0 0.0
    %2689 = vmatpush1.msra.mxu0 %v2568
    %2690 = vmatprep.subr.mxu0 0.0
    %2691 = vmatpush1.msra.mxu0 %v2569
    %2692 = vmatprep.subr.mxu0 0.0
    %2693 = vmatpush1.msra.mxu0 %v2570
    %2694 = vmatprep.subr.mxu0 0.0
    %2695 = vmatpush1.msra.mxu0 %v2571
    %2696 = vmatprep.subr.mxu0 0.0
    %2697 = vmatpush1.msra.mxu0 %v2572
    %2698 = vmatprep.subr.mxu0 0.0
    %2699 = vmatpush1.msra.mxu0 %v2573
    %2700 = vmatprep.subr.mxu0 0.0
    %2701 = vmatpush1.msra.mxu0 %v2574
    %2702 = vmatprep.subr.mxu0 0.0
    %2703 = vmatpush1.msra.mxu0 %v2575
    %2704 = vmatprep.subr.mxu0 0.0
    %2705 = vmatpush1.msra.mxu0 %v2576
    %2706 = vmatprep.subr.mxu0 0.0
    %2707 = vmatpush1.msra.mxu0 %v2577
    %2708 = vmatprep.subr.mxu0 0.0
    %2709 = vmatpush1.msra.mxu0 %v2578
    %2710 = vmatprep.subr.mxu0 0.0
    %2711 = vmatpush1.msra.mxu0 %v2579
    %2712 = vmatprep.subr.mxu0 0.0
    %2713 = vmatpush1.msra.mxu0 %v2580
    %2714 = vmatprep.subr.mxu0 0.0
    %2715 = vmatpush1.msra.mxu0 %v2581
    %2716 = vmatprep.subr.mxu0 0.0
    %2717 = vmatpush1.msra.mxu0 %v2582
    %2718 = vmatprep.subr.mxu0 0.0
    %2719 = vmatpush1.msra.mxu0 %v2583
    %2720 = vmatprep.subr.mxu0 0.0
    %2721 = vmatpush1.msra.mxu0 %v2584
    %2722 = vmatprep.subr.mxu0 0.0
    %2723 = vmatpush1.msra.mxu0 %v2585
    %2724 = vmatprep.subr.mxu0 0.0
    %2725 = vmatpush1.msra.mxu0 %v2586
    %2726 = vmatprep.mubr.f32.mxu0 %v2518
    %2727 = vmatmul.mubr.f32.gmra.mrb[0].mxu0 %v2517
    %v2728 = vpop.f32.mrb[0].mxu0
    %v2729 = vadd.f32 %v2654, %v2728
    %v2730 = vpop.f32.mrb[0].mxu0
    %2731 = vmatprep.mubr.f32.mxu0 %v2522
    %2732 = vmatmul.mubr.f32.gmra.mrb[0].mxu0 %v2521
    %v2733 = vpop.f32.mrb[0].mxu0
    %v2734 = vadd.f32 %v2659, %v2733
    %v2735 = vpop.f32.mrb[0].mxu0
    %2736 = vdwg.mxu0
    %2737 = vst [vmem:[#allocation5] sm:$0xff] %v2729
    %2738 = vst [vmem:[#allocation5 + $0x8] sm:$0xff] %v2734
    // Predicated region
    $region50: #{tpu_custom_call.1} parent=1 // pred_check
      _
    $region51: #{tpu_custom_call.1} parent=1 // pred_check_branch
      %2740 = sbr.rel (0) target = $region53
    $region52: #{tpu_custom_call.1} parent=1 // pred_region
      %s2742 = ssub.s32 256, 256
      %2743 = vsyncadd [#allocation4], %s2742
      %s2744 = sshll.u32 [#allocation5], 4
      %s2745 = int_to_ptr.vmem [resolvable:$true] %s2744
      %2750 = dma.vmem_to_hbm [thread:$0]  %s2745, 256, %s11, [#allocation4], 128, 128, 8
    $region53: #{tpu_custom_call.1} parent=1 // pred_fallthru
      _
    // Predicated region
    $region54: #{tpu_custom_call.1} parent=1 // pred_check
      _
    $region55: #{tpu_custom_call.1} parent=1 // pred_check_branch
      %2752 = sbr.rel (0) target = $region57
    $region56: #{tpu_custom_call.1} parent=1 // pred_region
      %2753 = dma.done [#allocation4], 256
    $region57: #{tpu_custom_call.1} parent=1 // pred_fallthru
      _
    %2754 = vsyncpa [#allocation3], 1
    %2755 = vsyncpa [#allocation4], 1

</llo_original>
